<compile_context>
chip_gen: v7x
topology: tpu7x:2x2x1
jax: 0.10.0
libtpu: 0.0.40
codegen_flags: <defaults>
</compile_context>

<pallas_src>
import jax
import jax.numpy as jnp
from jax.experimental import pallas as pl
from jax.experimental.pallas import tpu as pltpu  # noqa: F401  (TPU backend)

SUBLANE = 8        # pad batch to a full sublane group
LANE = 128         # lane-dense decoder output width
NUM_CLASSES = 3    # sentiment classes


# --------------------------------------------------------------------------
# In-kernel LSTM recurrence over a whole (static-length) sequence.
# --------------------------------------------------------------------------
def _lstm_scan(x_ref, wih_ref, whh_ref, b_ref, h0_ref, c0_ref):
    """x_ref: (T*Bp, E) bf16. Returns last hidden state (Bp, H) f32."""
    Bp, H = h0_ref.shape
    T = x_ref.shape[0] // Bp

    wih = wih_ref[...]                       # (E, 4H) bf16
    whh = whh_ref[...]                       # (H, 4H) bf16

    # All T input projections in one MXU call, (b_ih + b_hh) folded in.
    xw = (jnp.dot(x_ref[...], wih, preferred_element_type=jnp.float32)
          + b_ref[...])                      # (T*Bp, 4H) f32

    h = h0_ref[...]                          # (Bp, H) f32 carry
    c = c0_ref[...]                          # (Bp, H) f32 carry
    for t in range(T):                       # fully unrolled (T is tiny)
        gates = xw[t * Bp:(t + 1) * Bp, :] + jnp.dot(
            h.astype(jnp.bfloat16), whh, preferred_element_type=jnp.float32)
        # Full-width transcendentals (EUP); slices only feed the VPU combine.
        sig = jax.nn.sigmoid(gates)
        tnh = jnp.tanh(gates)
        i_g = sig[:, 0 * H:1 * H]
        f_g = sig[:, 1 * H:2 * H]
        g_g = tnh[:, 2 * H:3 * H]
        o_g = sig[:, 3 * H:4 * H]
        c = f_g * c + i_g * g_g
        h = o_g * jnp.tanh(c)
    return h


# --------------------------------------------------------------------------
# Fused kernel: left LSTM + right LSTM + decoder + masked softmax.
# --------------------------------------------------------------------------
def fused_kernel(lx_ref, rx_ref,
                 l_wih_ref, l_whh_ref, l_b_ref,
                 r_wih_ref, r_whh_ref, r_b_ref,
                 lh0_ref, lc0_ref, rh0_ref, rc0_ref,
                 dwl_ref, dwr_ref, db_ref,
                 o_ref):
    left_h = _lstm_scan(lx_ref, l_wih_ref, l_whh_ref, l_b_ref, lh0_ref, lc0_ref)
    right_h = _lstm_scan(rx_ref, r_wih_ref, r_whh_ref, r_b_ref, rh0_ref, rc0_ref)

    # Decoder on the implicit concat [left_h, right_h]: the weight is split
    # per half so no lane-concat is needed.  Pad class columns have zero
    # weight/bias -> pad logits are exactly 0 (small, exp-safe).
    logits = (jnp.dot(left_h.astype(jnp.bfloat16), dwl_ref[...],
                      preferred_element_type=jnp.float32)
              + jnp.dot(right_h.astype(jnp.bfloat16), dwr_ref[...],
                        preferred_element_type=jnp.float32)
              + db_ref[...])                                  # (Bp, 128) f32

    # Softmax over the 3 valid class lanes only (mask built from a 2-D iota).
    lane = jax.lax.broadcasted_iota(jnp.int32, logits.shape, 1)
    valid = lane < NUM_CLASSES
    m = jnp.max(jnp.where(valid, logits, jnp.float32(-1e30)),
                axis=-1, keepdims=True)                       # masked max
    e = jnp.where(valid, jnp.exp(logits - m), jnp.float32(0.0))
    denom = jnp.sum(e, axis=-1, keepdims=True)                # >= 1
    o_ref[...] = e / denom                                    # exact divide


# --------------------------------------------------------------------------
# TargetRNN forward (rnn_type='LSTM', rnn_layers=1).
# --------------------------------------------------------------------------
@jax.jit
def target_rnn_forward(params, left_tokens, right_tokens,
                       left_hidden, right_hidden):
    B = left_tokens.shape[1]
    Bp = max(SUBLANE, pl.cdiv(B, SUBLANE) * SUBLANE)
    E = params["emb"].shape[1]
    H = left_hidden[0].shape[-1]
    Tl = left_tokens.shape[0]
    Tr = right_tokens.shape[0]

    # Embedding lookup (gather) -- plain JAX glue.
    left_emb = params["emb"][left_tokens]        # (Tl, B, E)
    right_emb = params["emb"][right_tokens]      # (Tr, B, E)

    def pad_b(x, axis):
        pad = [(0, 0)] * x.ndim
        pad[axis] = (0, Bp - B)
        return jnp.pad(x, pad)

    # Batch padded to a sublane group; time folded into rows so the whole
    # input projection is a single (T*Bp, E) @ (E, 4H) matmul in-kernel.
    lx = pad_b(left_emb, 1).reshape(Tl * Bp, E).astype(jnp.bfloat16)
    rx = pad_b(right_emb, 1).reshape(Tr * Bp, E).astype(jnp.bfloat16)

    lh0, lc0 = left_hidden                        # (layers=1, B, H)
    rh0, rc0 = right_hidden
    lh0 = pad_b(lh0[0], 0)
    lc0 = pad_b(lc0[0], 0)
    rh0 = pad_b(rh0[0], 0)
    rc0 = pad_b(rc0[0], 0)

    def full(shape):
        return pl.BlockSpec(shape, lambda *_: (0,) * len(shape))

    out_padded = pl.pallas_call(
        fused_kernel,
        out_shape=jax.ShapeDtypeStruct((Bp, LANE), jnp.float32),
        grid=(),
        in_specs=[
            full((Tl * Bp, E)), full((Tr * Bp, E)),
            full((E, 4 * H)), full((H, 4 * H)), full((1, 4 * H)),
            full((E, 4 * H)), full((H, 4 * H)), full((1, 4 * H)),
            full((Bp, H)), full((Bp, H)), full((Bp, H)), full((Bp, H)),
            full((H, LANE)), full((H, LANE)), full((1, LANE)),
        ],
        out_specs=full((Bp, LANE)),
    )(lx, rx,
      params["l_wih_t"], params["l_whh_t"], params["l_bias"],
      params["r_wih_t"], params["r_whh_t"], params["r_bias"],
      lh0, lc0, rh0, rc0,
      params["dec_wl_pad"], params["dec_wr_pad"], params["dec_b_pad"])

    return out_padded[:B, :NUM_CLASSES]


# --------------------------------------------------------------------------
# Deterministic parameter init (mirrors PyTorch init_weights / nn.LSTM
# default init, rnn_layers=1). Matmul weights stored bf16 (f32 accumulation
# in-kernel); biases / carries stay f32.
# --------------------------------------------------------------------------
def init_params(key, vocab_size, emb_size, rnn_size):
    ks = jax.random.split(key, 10)
    initrange = 0.1
    bound = 1.0 / jnp.sqrt(jnp.float32(rnn_size))

    def uni(k, shape, b):
        return jax.random.uniform(k, shape, jnp.float32, minval=-b, maxval=b)

    H4 = 4 * rnn_size
    dec_w_t = uni(ks[9], (2 * rnn_size, NUM_CLASSES), initrange)    # (2H, 3)
    dec_wl = jnp.zeros((rnn_size, LANE), jnp.float32).at[:, :NUM_CLASSES].set(
        dec_w_t[:rnn_size])
    dec_wr = jnp.zeros((rnn_size, LANE), jnp.float32).at[:, :NUM_CLASSES].set(
        dec_w_t[rnn_size:])
    dec_b = jnp.zeros((1, LANE), jnp.float32)       # decoder bias = 0 (fill_(0))

    params = {
        "emb": uni(ks[0], (vocab_size, emb_size), initrange),
        # left LSTM (transposed for x @ W; gate order i,f,g,o)
        "l_wih_t": uni(ks[1], (emb_size, H4), bound).astype(jnp.bfloat16),
        "l_whh_t": uni(ks[2], (rnn_size, H4), bound).astype(jnp.bfloat16),
        "l_bias": uni(ks[3], (1, H4), bound) + uni(ks[4], (1, H4), bound),
        # right LSTM
        "r_wih_t": uni(ks[5], (emb_size, H4), bound).astype(jnp.bfloat16),
        "r_whh_t": uni(ks[6], (rnn_size, H4), bound).astype(jnp.bfloat16),
        "r_bias": uni(ks[7], (1, H4), bound) + uni(ks[8], (1, H4), bound),
        # decoder: weight uniform(-0.1, 0.1), bias zero (padded lane-dense)
        "dec_wl_pad": dec_wl.astype(jnp.bfloat16),
        "dec_wr_pad": dec_wr.astype(jnp.bfloat16),
        "dec_b_pad": dec_b,
    }
    return params


# --------------------------------------------------------------------------
# Pure-JAX reference (same bf16 weights, f32 accumulation) for validation.
# --------------------------------------------------------------------------
def reference_forward(params, left_tokens, right_tokens,
                      left_hidden, right_hidden):
    H = left_hidden[0].shape[-1]

    def lstm(emb, wih_t, whh_t, bias, h, c):
        for t in range(emb.shape[0]):
            gates = (jnp.dot(emb[t].astype(jnp.bfloat16), wih_t,
                             preferred_element_type=jnp.float32)
                     + jnp.dot(h.astype(jnp.bfloat16), whh_t,
                               preferred_element_type=jnp.float32)
                     + bias)
            i_g = jax.nn.sigmoid(gates[:, 0 * H:1 * H])
            f_g = jax.nn.sigmoid(gates[:, 1 * H:2 * H])
            g_g = jnp.tanh(gates[:, 2 * H:3 * H])
            o_g = jax.nn.sigmoid(gates[:, 3 * H:4 * H])
            c = f_g * c + i_g * g_g
            h = o_g * jnp.tanh(c)
        return h

    lh = lstm(params["emb"][left_tokens], params["l_wih_t"],
              params["l_whh_t"], params["l_bias"],
              left_hidden[0][0], left_hidden[1][0])
    rh = lstm(params["emb"][right_tokens], params["r_wih_t"],
              params["r_whh_t"], params["r_bias"],
              right_hidden[0][0], right_hidden[1][0])
    logits = (jnp.dot(lh.astype(jnp.bfloat16),
                      params["dec_wl_pad"][:, :NUM_CLASSES],
                      preferred_element_type=jnp.float32)
              + jnp.dot(rh.astype(jnp.bfloat16),
                        params["dec_wr_pad"][:, :NUM_CLASSES],
                        preferred_element_type=jnp.float32)
              + params["dec_b_pad"][:, :NUM_CLASSES])
    return jax.nn.softmax(logits, axis=-1)


if __name__ == "__main__":
    VOCAB = 50
    EMB = 32
    HID = 32
    BATCH = 2
    T_LEFT = 8
    T_RIGHT = 6
    LAYERS = 1  # rnn_layers = 1 for this synthetic instantiation

    key = jax.random.PRNGKey(0)
    kp, kl, kr = jax.random.split(key, 3)
    params = init_params(kp, VOCAB, EMB, HID)

    left_tokens = jax.random.randint(kl, (T_LEFT, BATCH), 0, VOCAB, jnp.int32)
    right_tokens = jax.random.randint(kr, (T_RIGHT, BATCH), 0, VOCAB, jnp.int32)

    # init_hidden: zeros, (num_layers, batch, rnn_size) for (h, c)
    left_hidden = (jnp.zeros((LAYERS, BATCH, HID), jnp.float32),
                   jnp.zeros((LAYERS, BATCH, HID), jnp.float32))
    right_hidden = (jnp.zeros((LAYERS, BATCH, HID), jnp.float32),
                    jnp.zeros((LAYERS, BATCH, HID), jnp.float32))

    out = target_rnn_forward(params, left_tokens, right_tokens,
                             left_hidden, right_hidden)
    out = jax.block_until_ready(out)

    assert out.shape == (BATCH, NUM_CLASSES)
    assert bool(jnp.all(jnp.isfinite(out)))
    # Exact divide -> softmax rows sum to 1 within f32 rounding.
    assert bool(jnp.allclose(jnp.sum(out, axis=-1), 1.0, atol=1e-3))
    # Match the pure-JAX reference forward.
    ref = reference_forward(params, left_tokens, right_tokens,
                            left_hidden, right_hidden)
    assert bool(jnp.allclose(out, ref, atol=1e-2))
    print("KERNEL_OK")
</pallas_src>

<mosaic_0001>
module attributes {stable_mosaic.version = 11 : i64} {
  func.func @fused_kernel(%arg0: memref<64x32xbf16, #tpu.memory_space<vmem>>, %arg1: memref<48x32xbf16, #tpu.memory_space<vmem>>, %arg2: memref<32x128xbf16, #tpu.memory_space<vmem>>, %arg3: memref<32x128xbf16, #tpu.memory_space<vmem>>, %arg4: memref<1x128xf32, #tpu.memory_space<vmem>>, %arg5: memref<32x128xbf16, #tpu.memory_space<vmem>>, %arg6: memref<32x128xbf16, #tpu.memory_space<vmem>>, %arg7: memref<1x128xf32, #tpu.memory_space<vmem>>, %arg8: memref<8x32xf32, #tpu.memory_space<vmem>>, %arg9: memref<8x32xf32, #tpu.memory_space<vmem>>, %arg10: memref<8x32xf32, #tpu.memory_space<vmem>>, %arg11: memref<8x32xf32, #tpu.memory_space<vmem>>, %arg12: memref<32x128xbf16, #tpu.memory_space<vmem>>, %arg13: memref<32x128xbf16, #tpu.memory_space<vmem>>, %arg14: memref<1x128xf32, #tpu.memory_space<vmem>>, %arg15: memref<8x128xf32, #tpu.memory_space<vmem>>) attributes {dimension_semantics = [], scalar_prefetch = 0 : i64, scratch_operands = 0 : i64, tpu.core_type = #tpu.core_type<tc>} {
    %c0 = arith.constant 0 : index
    %c0_0 = arith.constant 0 : index
    %0 = vector.load %arg2[%c0, %c0_0] : memref<32x128xbf16, #tpu.memory_space<vmem>>, vector<32x128xbf16>
    %c0_1 = arith.constant 0 : index
    %c0_2 = arith.constant 0 : index
    %1 = vector.load %arg3[%c0_1, %c0_2] : memref<32x128xbf16, #tpu.memory_space<vmem>>, vector<32x128xbf16>
    %c0_3 = arith.constant 0 : index
    %c0_4 = arith.constant 0 : index
    %2 = vector.load %arg0[%c0_3, %c0_4] : memref<64x32xbf16, #tpu.memory_space<vmem>>, vector<64x32xbf16>
    %cst = arith.constant dense<0.000000e+00> : vector<64x128xf32>
    %3 = tpu.matmul %2, %0, %cst {dimension_numbers = #tpu.dot_dimension_numbers<[1], [0], [0], [1], [0, 0, 1, 1], [], []>} : vector<64x32xbf16>, vector<32x128xbf16>, vector<64x128xf32> -> vector<64x128xf32>
    %c0_5 = arith.constant 0 : index
    %c0_6 = arith.constant 0 : index
    %4 = vector.load %arg4[%c0_5, %c0_6] : memref<1x128xf32, #tpu.memory_space<vmem>>, vector<1x128xf32>
    %5 = vector.broadcast %4 : vector<1x128xf32> to vector<64x128xf32>
    %6 = arith.addf %3, %5 : vector<64x128xf32>
    %c0_7 = arith.constant 0 : index
    %c0_8 = arith.constant 0 : index
    %7 = vector.load %arg8[%c0_7, %c0_8] : memref<8x32xf32, #tpu.memory_space<vmem>>, vector<8x32xf32>
    %c0_9 = arith.constant 0 : index
    %c0_10 = arith.constant 0 : index
    %8 = vector.load %arg9[%c0_9, %c0_10] : memref<8x32xf32, #tpu.memory_space<vmem>>, vector<8x32xf32>
    %9 = vector.extract_strided_slice %6 {offsets = [0, 0], sizes = [8, 128], strides = [1, 1]} : vector<64x128xf32> to vector<8x128xf32>
    %10 = arith.truncf %7 : vector<8x32xf32> to vector<8x32xbf16>
    %cst_11 = arith.constant dense<0.000000e+00> : vector<8x128xf32>
    %11 = tpu.matmul %10, %1, %cst_11 {dimension_numbers = #tpu.dot_dimension_numbers<[1], [0], [0], [1], [0, 0, 1, 1], [], []>} : vector<8x32xbf16>, vector<32x128xbf16>, vector<8x128xf32> -> vector<8x128xf32>
    %12 = arith.addf %9, %11 : vector<8x128xf32>
    %13 = arith.negf %12 : vector<8x128xf32>
    %14 = math.exp %13 : vector<8x128xf32>
    %cst_12 = arith.constant 1.000000e+00 : f32
    %15 = vector.broadcast %cst_12 : f32 to vector<8x128xf32>
    %16 = arith.addf %15, %14 : vector<8x128xf32>
    %17 = arith.divf %15, %16 : vector<8x128xf32>
    %18 = math.tanh %12 : vector<8x128xf32>
    %19 = vector.extract_strided_slice %17 {offsets = [0, 0], sizes = [8, 32], strides = [1, 1]} : vector<8x128xf32> to vector<8x32xf32>
    %20 = vector.extract_strided_slice %17 {offsets = [0, 32], sizes = [8, 32], strides = [1, 1]} : vector<8x128xf32> to vector<8x32xf32>
    %21 = vector.extract_strided_slice %18 {offsets = [0, 64], sizes = [8, 32], strides = [1, 1]} : vector<8x128xf32> to vector<8x32xf32>
    %22 = vector.extract_strided_slice %17 {offsets = [0, 96], sizes = [8, 32], strides = [1, 1]} : vector<8x128xf32> to vector<8x32xf32>
    %23 = arith.mulf %20, %8 : vector<8x32xf32>
    %24 = arith.mulf %19, %21 : vector<8x32xf32>
    %25 = arith.addf %23, %24 : vector<8x32xf32>
    %26 = math.tanh %25 : vector<8x32xf32>
    %27 = arith.mulf %22, %26 : vector<8x32xf32>
    %28 = vector.extract_strided_slice %6 {offsets = [8, 0], sizes = [8, 128], strides = [1, 1]} : vector<64x128xf32> to vector<8x128xf32>
    %29 = arith.truncf %27 : vector<8x32xf32> to vector<8x32xbf16>
    %cst_13 = arith.constant dense<0.000000e+00> : vector<8x128xf32>
    %30 = tpu.matmul %29, %1, %cst_13 {dimension_numbers = #tpu.dot_dimension_numbers<[1], [0], [0], [1], [0, 0, 1, 1], [], []>} : vector<8x32xbf16>, vector<32x128xbf16>, vector<8x128xf32> -> vector<8x128xf32>
    %31 = arith.addf %28, %30 : vector<8x128xf32>
    %32 = arith.negf %31 : vector<8x128xf32>
    %33 = math.exp %32 : vector<8x128xf32>
    %cst_14 = arith.constant 1.000000e+00 : f32
    %34 = vector.broadcast %cst_14 : f32 to vector<8x128xf32>
    %35 = arith.addf %34, %33 : vector<8x128xf32>
    %36 = arith.divf %34, %35 : vector<8x128xf32>
    %37 = math.tanh %31 : vector<8x128xf32>
    %38 = vector.extract_strided_slice %36 {offsets = [0, 0], sizes = [8, 32], strides = [1, 1]} : vector<8x128xf32> to vector<8x32xf32>
    %39 = vector.extract_strided_slice %36 {offsets = [0, 32], sizes = [8, 32], strides = [1, 1]} : vector<8x128xf32> to vector<8x32xf32>
    %40 = vector.extract_strided_slice %37 {offsets = [0, 64], sizes = [8, 32], strides = [1, 1]} : vector<8x128xf32> to vector<8x32xf32>
    %41 = vector.extract_strided_slice %36 {offsets = [0, 96], sizes = [8, 32], strides = [1, 1]} : vector<8x128xf32> to vector<8x32xf32>
    %42 = arith.mulf %39, %25 : vector<8x32xf32>
    %43 = arith.mulf %38, %40 : vector<8x32xf32>
    %44 = arith.addf %42, %43 : vector<8x32xf32>
    %45 = math.tanh %44 : vector<8x32xf32>
    %46 = arith.mulf %41, %45 : vector<8x32xf32>
    %47 = vector.extract_strided_slice %6 {offsets = [16, 0], sizes = [8, 128], strides = [1, 1]} : vector<64x128xf32> to vector<8x128xf32>
    %48 = arith.truncf %46 : vector<8x32xf32> to vector<8x32xbf16>
    %cst_15 = arith.constant dense<0.000000e+00> : vector<8x128xf32>
    %49 = tpu.matmul %48, %1, %cst_15 {dimension_numbers = #tpu.dot_dimension_numbers<[1], [0], [0], [1], [0, 0, 1, 1], [], []>} : vector<8x32xbf16>, vector<32x128xbf16>, vector<8x128xf32> -> vector<8x128xf32>
    %50 = arith.addf %47, %49 : vector<8x128xf32>
    %51 = arith.negf %50 : vector<8x128xf32>
    %52 = math.exp %51 : vector<8x128xf32>
    %cst_16 = arith.constant 1.000000e+00 : f32
    %53 = vector.broadcast %cst_16 : f32 to vector<8x128xf32>
    %54 = arith.addf %53, %52 : vector<8x128xf32>
    %55 = arith.divf %53, %54 : vector<8x128xf32>
    %56 = math.tanh %50 : vector<8x128xf32>
    %57 = vector.extract_strided_slice %55 {offsets = [0, 0], sizes = [8, 32], strides = [1, 1]} : vector<8x128xf32> to vector<8x32xf32>
    %58 = vector.extract_strided_slice %55 {offsets = [0, 32], sizes = [8, 32], strides = [1, 1]} : vector<8x128xf32> to vector<8x32xf32>
    %59 = vector.extract_strided_slice %56 {offsets = [0, 64], sizes = [8, 32], strides = [1, 1]} : vector<8x128xf32> to vector<8x32xf32>
    %60 = vector.extract_strided_slice %55 {offsets = [0, 96], sizes = [8, 32], strides = [1, 1]} : vector<8x128xf32> to vector<8x32xf32>
    %61 = arith.mulf %58, %44 : vector<8x32xf32>
    %62 = arith.mulf %57, %59 : vector<8x32xf32>
    %63 = arith.addf %61, %62 : vector<8x32xf32>
    %64 = math.tanh %63 : vector<8x32xf32>
    %65 = arith.mulf %60, %64 : vector<8x32xf32>
    %66 = vector.extract_strided_slice %6 {offsets = [24, 0], sizes = [8, 128], strides = [1, 1]} : vector<64x128xf32> to vector<8x128xf32>
    %67 = arith.truncf %65 : vector<8x32xf32> to vector<8x32xbf16>
    %cst_17 = arith.constant dense<0.000000e+00> : vector<8x128xf32>
    %68 = tpu.matmul %67, %1, %cst_17 {dimension_numbers = #tpu.dot_dimension_numbers<[1], [0], [0], [1], [0, 0, 1, 1], [], []>} : vector<8x32xbf16>, vector<32x128xbf16>, vector<8x128xf32> -> vector<8x128xf32>
    %69 = arith.addf %66, %68 : vector<8x128xf32>
    %70 = arith.negf %69 : vector<8x128xf32>
    %71 = math.exp %70 : vector<8x128xf32>
    %cst_18 = arith.constant 1.000000e+00 : f32
    %72 = vector.broadcast %cst_18 : f32 to vector<8x128xf32>
    %73 = arith.addf %72, %71 : vector<8x128xf32>
    %74 = arith.divf %72, %73 : vector<8x128xf32>
    %75 = math.tanh %69 : vector<8x128xf32>
    %76 = vector.extract_strided_slice %74 {offsets = [0, 0], sizes = [8, 32], strides = [1, 1]} : vector<8x128xf32> to vector<8x32xf32>
    %77 = vector.extract_strided_slice %74 {offsets = [0, 32], sizes = [8, 32], strides = [1, 1]} : vector<8x128xf32> to vector<8x32xf32>
    %78 = vector.extract_strided_slice %75 {offsets = [0, 64], sizes = [8, 32], strides = [1, 1]} : vector<8x128xf32> to vector<8x32xf32>
    %79 = vector.extract_strided_slice %74 {offsets = [0, 96], sizes = [8, 32], strides = [1, 1]} : vector<8x128xf32> to vector<8x32xf32>
    %80 = arith.mulf %77, %63 : vector<8x32xf32>
    %81 = arith.mulf %76, %78 : vector<8x32xf32>
    %82 = arith.addf %80, %81 : vector<8x32xf32>
    %83 = math.tanh %82 : vector<8x32xf32>
    %84 = arith.mulf %79, %83 : vector<8x32xf32>
    %85 = vector.extract_strided_slice %6 {offsets = [32, 0], sizes = [8, 128], strides = [1, 1]} : vector<64x128xf32> to vector<8x128xf32>
    %86 = arith.truncf %84 : vector<8x32xf32> to vector<8x32xbf16>
    %cst_19 = arith.constant dense<0.000000e+00> : vector<8x128xf32>
    %87 = tpu.matmul %86, %1, %cst_19 {dimension_numbers = #tpu.dot_dimension_numbers<[1], [0], [0], [1], [0, 0, 1, 1], [], []>} : vector<8x32xbf16>, vector<32x128xbf16>, vector<8x128xf32> -> vector<8x128xf32>
    %88 = arith.addf %85, %87 : vector<8x128xf32>
    %89 = arith.negf %88 : vector<8x128xf32>
    %90 = math.exp %89 : vector<8x128xf32>
    %cst_20 = arith.constant 1.000000e+00 : f32
    %91 = vector.broadcast %cst_20 : f32 to vector<8x128xf32>
    %92 = arith.addf %91, %90 : vector<8x128xf32>
    %93 = arith.divf %91, %92 : vector<8x128xf32>
    %94 = math.tanh %88 : vector<8x128xf32>
    %95 = vector.extract_strided_slice %93 {offsets = [0, 0], sizes = [8, 32], strides = [1, 1]} : vector<8x128xf32> to vector<8x32xf32>
    %96 = vector.extract_strided_slice %93 {offsets = [0, 32], sizes = [8, 32], strides = [1, 1]} : vector<8x128xf32> to vector<8x32xf32>
    %97 = vector.extract_strided_slice %94 {offsets = [0, 64], sizes = [8, 32], strides = [1, 1]} : vector<8x128xf32> to vector<8x32xf32>
    %98 = vector.extract_strided_slice %93 {offsets = [0, 96], sizes = [8, 32], strides = [1, 1]} : vector<8x128xf32> to vector<8x32xf32>
    %99 = arith.mulf %96, %82 : vector<8x32xf32>
    %100 = arith.mulf %95, %97 : vector<8x32xf32>
    %101 = arith.addf %99, %100 : vector<8x32xf32>
    %102 = math.tanh %101 : vector<8x32xf32>
    %103 = arith.mulf %98, %102 : vector<8x32xf32>
    %104 = vector.extract_strided_slice %6 {offsets = [40, 0], sizes = [8, 128], strides = [1, 1]} : vector<64x128xf32> to vector<8x128xf32>
    %105 = arith.truncf %103 : vector<8x32xf32> to vector<8x32xbf16>
    %cst_21 = arith.constant dense<0.000000e+00> : vector<8x128xf32>
    %106 = tpu.matmul %105, %1, %cst_21 {dimension_numbers = #tpu.dot_dimension_numbers<[1], [0], [0], [1], [0, 0, 1, 1], [], []>} : vector<8x32xbf16>, vector<32x128xbf16>, vector<8x128xf32> -> vector<8x128xf32>
    %107 = arith.addf %104, %106 : vector<8x128xf32>
    %108 = arith.negf %107 : vector<8x128xf32>
    %109 = math.exp %108 : vector<8x128xf32>
    %cst_22 = arith.constant 1.000000e+00 : f32
    %110 = vector.broadcast %cst_22 : f32 to vector<8x128xf32>
    %111 = arith.addf %110, %109 : vector<8x128xf32>
    %112 = arith.divf %110, %111 : vector<8x128xf32>
    %113 = math.tanh %107 : vector<8x128xf32>
    %114 = vector.extract_strided_slice %112 {offsets = [0, 0], sizes = [8, 32], strides = [1, 1]} : vector<8x128xf32> to vector<8x32xf32>
    %115 = vector.extract_strided_slice %112 {offsets = [0, 32], sizes = [8, 32], strides = [1, 1]} : vector<8x128xf32> to vector<8x32xf32>
    %116 = vector.extract_strided_slice %113 {offsets = [0, 64], sizes = [8, 32], strides = [1, 1]} : vector<8x128xf32> to vector<8x32xf32>
    %117 = vector.extract_strided_slice %112 {offsets = [0, 96], sizes = [8, 32], strides = [1, 1]} : vector<8x128xf32> to vector<8x32xf32>
    %118 = arith.mulf %115, %101 : vector<8x32xf32>
    %119 = arith.mulf %114, %116 : vector<8x32xf32>
    %120 = arith.addf %118, %119 : vector<8x32xf32>
    %121 = math.tanh %120 : vector<8x32xf32>
    %122 = arith.mulf %117, %121 : vector<8x32xf32>
    %123 = vector.extract_strided_slice %6 {offsets = [48, 0], sizes = [8, 128], strides = [1, 1]} : vector<64x128xf32> to vector<8x128xf32>
    %124 = arith.truncf %122 : vector<8x32xf32> to vector<8x32xbf16>
    %cst_23 = arith.constant dense<0.000000e+00> : vector<8x128xf32>
    %125 = tpu.matmul %124, %1, %cst_23 {dimension_numbers = #tpu.dot_dimension_numbers<[1], [0], [0], [1], [0, 0, 1, 1], [], []>} : vector<8x32xbf16>, vector<32x128xbf16>, vector<8x128xf32> -> vector<8x128xf32>
    %126 = arith.addf %123, %125 : vector<8x128xf32>
    %127 = arith.negf %126 : vector<8x128xf32>
    %128 = math.exp %127 : vector<8x128xf32>
    %cst_24 = arith.constant 1.000000e+00 : f32
    %129 = vector.broadcast %cst_24 : f32 to vector<8x128xf32>
    %130 = arith.addf %129, %128 : vector<8x128xf32>
    %131 = arith.divf %129, %130 : vector<8x128xf32>
    %132 = math.tanh %126 : vector<8x128xf32>
    %133 = vector.extract_strided_slice %131 {offsets = [0, 0], sizes = [8, 32], strides = [1, 1]} : vector<8x128xf32> to vector<8x32xf32>
    %134 = vector.extract_strided_slice %131 {offsets = [0, 32], sizes = [8, 32], strides = [1, 1]} : vector<8x128xf32> to vector<8x32xf32>
    %135 = vector.extract_strided_slice %132 {offsets = [0, 64], sizes = [8, 32], strides = [1, 1]} : vector<8x128xf32> to vector<8x32xf32>
    %136 = vector.extract_strided_slice %131 {offsets = [0, 96], sizes = [8, 32], strides = [1, 1]} : vector<8x128xf32> to vector<8x32xf32>
    %137 = arith.mulf %134, %120 : vector<8x32xf32>
    %138 = arith.mulf %133, %135 : vector<8x32xf32>
    %139 = arith.addf %137, %138 : vector<8x32xf32>
    %140 = math.tanh %139 : vector<8x32xf32>
    %141 = arith.mulf %136, %140 : vector<8x32xf32>
    %142 = vector.extract_strided_slice %6 {offsets = [56, 0], sizes = [8, 128], strides = [1, 1]} : vector<64x128xf32> to vector<8x128xf32>
    %143 = arith.truncf %141 : vector<8x32xf32> to vector<8x32xbf16>
    %cst_25 = arith.constant dense<0.000000e+00> : vector<8x128xf32>
    %144 = tpu.matmul %143, %1, %cst_25 {dimension_numbers = #tpu.dot_dimension_numbers<[1], [0], [0], [1], [0, 0, 1, 1], [], []>} : vector<8x32xbf16>, vector<32x128xbf16>, vector<8x128xf32> -> vector<8x128xf32>
    %145 = arith.addf %142, %144 : vector<8x128xf32>
    %146 = arith.negf %145 : vector<8x128xf32>
    %147 = math.exp %146 : vector<8x128xf32>
    %cst_26 = arith.constant 1.000000e+00 : f32
    %148 = vector.broadcast %cst_26 : f32 to vector<8x128xf32>
    %149 = arith.addf %148, %147 : vector<8x128xf32>
    %150 = arith.divf %148, %149 : vector<8x128xf32>
    %151 = math.tanh %145 : vector<8x128xf32>
    %152 = vector.extract_strided_slice %150 {offsets = [0, 0], sizes = [8, 32], strides = [1, 1]} : vector<8x128xf32> to vector<8x32xf32>
    %153 = vector.extract_strided_slice %150 {offsets = [0, 32], sizes = [8, 32], strides = [1, 1]} : vector<8x128xf32> to vector<8x32xf32>
    %154 = vector.extract_strided_slice %151 {offsets = [0, 64], sizes = [8, 32], strides = [1, 1]} : vector<8x128xf32> to vector<8x32xf32>
    %155 = vector.extract_strided_slice %150 {offsets = [0, 96], sizes = [8, 32], strides = [1, 1]} : vector<8x128xf32> to vector<8x32xf32>
    %156 = arith.mulf %153, %139 : vector<8x32xf32>
    %157 = arith.mulf %152, %154 : vector<8x32xf32>
    %158 = arith.addf %156, %157 : vector<8x32xf32>
    %159 = math.tanh %158 : vector<8x32xf32>
    %160 = arith.mulf %155, %159 : vector<8x32xf32>
    %c0_27 = arith.constant 0 : index
    %c0_28 = arith.constant 0 : index
    %161 = vector.load %arg5[%c0_27, %c0_28] : memref<32x128xbf16, #tpu.memory_space<vmem>>, vector<32x128xbf16>
    %c0_29 = arith.constant 0 : index
    %c0_30 = arith.constant 0 : index
    %162 = vector.load %arg6[%c0_29, %c0_30] : memref<32x128xbf16, #tpu.memory_space<vmem>>, vector<32x128xbf16>
    %c0_31 = arith.constant 0 : index
    %c0_32 = arith.constant 0 : index
    %163 = vector.load %arg1[%c0_31, %c0_32] : memref<48x32xbf16, #tpu.memory_space<vmem>>, vector<48x32xbf16>
    %cst_33 = arith.constant dense<0.000000e+00> : vector<48x128xf32>
    %164 = tpu.matmul %163, %161, %cst_33 {dimension_numbers = #tpu.dot_dimension_numbers<[1], [0], [0], [1], [0, 0, 1, 1], [], []>} : vector<48x32xbf16>, vector<32x128xbf16>, vector<48x128xf32> -> vector<48x128xf32>
    %c0_34 = arith.constant 0 : index
    %c0_35 = arith.constant 0 : index
    %165 = vector.load %arg7[%c0_34, %c0_35] : memref<1x128xf32, #tpu.memory_space<vmem>>, vector<1x128xf32>
    %166 = vector.broadcast %165 : vector<1x128xf32> to vector<48x128xf32>
    %167 = arith.addf %164, %166 : vector<48x128xf32>
    %c0_36 = arith.constant 0 : index
    %c0_37 = arith.constant 0 : index
    %168 = vector.load %arg10[%c0_36, %c0_37] : memref<8x32xf32, #tpu.memory_space<vmem>>, vector<8x32xf32>
    %c0_38 = arith.constant 0 : index
    %c0_39 = arith.constant 0 : index
    %169 = vector.load %arg11[%c0_38, %c0_39] : memref<8x32xf32, #tpu.memory_space<vmem>>, vector<8x32xf32>
    %170 = vector.extract_strided_slice %167 {offsets = [0, 0], sizes = [8, 128], strides = [1, 1]} : vector<48x128xf32> to vector<8x128xf32>
    %171 = arith.truncf %168 : vector<8x32xf32> to vector<8x32xbf16>
    %cst_40 = arith.constant dense<0.000000e+00> : vector<8x128xf32>
    %172 = tpu.matmul %171, %162, %cst_40 {dimension_numbers = #tpu.dot_dimension_numbers<[1], [0], [0], [1], [0, 0, 1, 1], [], []>} : vector<8x32xbf16>, vector<32x128xbf16>, vector<8x128xf32> -> vector<8x128xf32>
    %173 = arith.addf %170, %172 : vector<8x128xf32>
    %174 = arith.negf %173 : vector<8x128xf32>
    %175 = math.exp %174 : vector<8x128xf32>
    %cst_41 = arith.constant 1.000000e+00 : f32
    %176 = vector.broadcast %cst_41 : f32 to vector<8x128xf32>
    %177 = arith.addf %176, %175 : vector<8x128xf32>
    %178 = arith.divf %176, %177 : vector<8x128xf32>
    %179 = math.tanh %173 : vector<8x128xf32>
    %180 = vector.extract_strided_slice %178 {offsets = [0, 0], sizes = [8, 32], strides = [1, 1]} : vector<8x128xf32> to vector<8x32xf32>
    %181 = vector.extract_strided_slice %178 {offsets = [0, 32], sizes = [8, 32], strides = [1, 1]} : vector<8x128xf32> to vector<8x32xf32>
    %182 = vector.extract_strided_slice %179 {offsets = [0, 64], sizes = [8, 32], strides = [1, 1]} : vector<8x128xf32> to vector<8x32xf32>
    %183 = vector.extract_strided_slice %178 {offsets = [0, 96], sizes = [8, 32], strides = [1, 1]} : vector<8x128xf32> to vector<8x32xf32>
    %184 = arith.mulf %181, %169 : vector<8x32xf32>
    %185 = arith.mulf %180, %182 : vector<8x32xf32>
    %186 = arith.addf %184, %185 : vector<8x32xf32>
    %187 = math.tanh %186 : vector<8x32xf32>
    %188 = arith.mulf %183, %187 : vector<8x32xf32>
    %189 = vector.extract_strided_slice %167 {offsets = [8, 0], sizes = [8, 128], strides = [1, 1]} : vector<48x128xf32> to vector<8x128xf32>
    %190 = arith.truncf %188 : vector<8x32xf32> to vector<8x32xbf16>
    %cst_42 = arith.constant dense<0.000000e+00> : vector<8x128xf32>
    %191 = tpu.matmul %190, %162, %cst_42 {dimension_numbers = #tpu.dot_dimension_numbers<[1], [0], [0], [1], [0, 0, 1, 1], [], []>} : vector<8x32xbf16>, vector<32x128xbf16>, vector<8x128xf32> -> vector<8x128xf32>
    %192 = arith.addf %189, %191 : vector<8x128xf32>
    %193 = arith.negf %192 : vector<8x128xf32>
    %194 = math.exp %193 : vector<8x128xf32>
    %cst_43 = arith.constant 1.000000e+00 : f32
    %195 = vector.broadcast %cst_43 : f32 to vector<8x128xf32>
    %196 = arith.addf %195, %194 : vector<8x128xf32>
    %197 = arith.divf %195, %196 : vector<8x128xf32>
    %198 = math.tanh %192 : vector<8x128xf32>
    %199 = vector.extract_strided_slice %197 {offsets = [0, 0], sizes = [8, 32], strides = [1, 1]} : vector<8x128xf32> to vector<8x32xf32>
    %200 = vector.extract_strided_slice %197 {offsets = [0, 32], sizes = [8, 32], strides = [1, 1]} : vector<8x128xf32> to vector<8x32xf32>
    %201 = vector.extract_strided_slice %198 {offsets = [0, 64], sizes = [8, 32], strides = [1, 1]} : vector<8x128xf32> to vector<8x32xf32>
    %202 = vector.extract_strided_slice %197 {offsets = [0, 96], sizes = [8, 32], strides = [1, 1]} : vector<8x128xf32> to vector<8x32xf32>
    %203 = arith.mulf %200, %186 : vector<8x32xf32>
    %204 = arith.mulf %199, %201 : vector<8x32xf32>
    %205 = arith.addf %203, %204 : vector<8x32xf32>
    %206 = math.tanh %205 : vector<8x32xf32>
    %207 = arith.mulf %202, %206 : vector<8x32xf32>
    %208 = vector.extract_strided_slice %167 {offsets = [16, 0], sizes = [8, 128], strides = [1, 1]} : vector<48x128xf32> to vector<8x128xf32>
    %209 = arith.truncf %207 : vector<8x32xf32> to vector<8x32xbf16>
    %cst_44 = arith.constant dense<0.000000e+00> : vector<8x128xf32>
    %210 = tpu.matmul %209, %162, %cst_44 {dimension_numbers = #tpu.dot_dimension_numbers<[1], [0], [0], [1], [0, 0, 1, 1], [], []>} : vector<8x32xbf16>, vector<32x128xbf16>, vector<8x128xf32> -> vector<8x128xf32>
    %211 = arith.addf %208, %210 : vector<8x128xf32>
    %212 = arith.negf %211 : vector<8x128xf32>
    %213 = math.exp %212 : vector<8x128xf32>
    %cst_45 = arith.constant 1.000000e+00 : f32
    %214 = vector.broadcast %cst_45 : f32 to vector<8x128xf32>
    %215 = arith.addf %214, %213 : vector<8x128xf32>
    %216 = arith.divf %214, %215 : vector<8x128xf32>
    %217 = math.tanh %211 : vector<8x128xf32>
    %218 = vector.extract_strided_slice %216 {offsets = [0, 0], sizes = [8, 32], strides = [1, 1]} : vector<8x128xf32> to vector<8x32xf32>
    %219 = vector.extract_strided_slice %216 {offsets = [0, 32], sizes = [8, 32], strides = [1, 1]} : vector<8x128xf32> to vector<8x32xf32>
    %220 = vector.extract_strided_slice %217 {offsets = [0, 64], sizes = [8, 32], strides = [1, 1]} : vector<8x128xf32> to vector<8x32xf32>
    %221 = vector.extract_strided_slice %216 {offsets = [0, 96], sizes = [8, 32], strides = [1, 1]} : vector<8x128xf32> to vector<8x32xf32>
    %222 = arith.mulf %219, %205 : vector<8x32xf32>
    %223 = arith.mulf %218, %220 : vector<8x32xf32>
    %224 = arith.addf %222, %223 : vector<8x32xf32>
    %225 = math.tanh %224 : vector<8x32xf32>
    %226 = arith.mulf %221, %225 : vector<8x32xf32>
    %227 = vector.extract_strided_slice %167 {offsets = [24, 0], sizes = [8, 128], strides = [1, 1]} : vector<48x128xf32> to vector<8x128xf32>
    %228 = arith.truncf %226 : vector<8x32xf32> to vector<8x32xbf16>
    %cst_46 = arith.constant dense<0.000000e+00> : vector<8x128xf32>
    %229 = tpu.matmul %228, %162, %cst_46 {dimension_numbers = #tpu.dot_dimension_numbers<[1], [0], [0], [1], [0, 0, 1, 1], [], []>} : vector<8x32xbf16>, vector<32x128xbf16>, vector<8x128xf32> -> vector<8x128xf32>
    %230 = arith.addf %227, %229 : vector<8x128xf32>
    %231 = arith.negf %230 : vector<8x128xf32>
    %232 = math.exp %231 : vector<8x128xf32>
    %cst_47 = arith.constant 1.000000e+00 : f32
    %233 = vector.broadcast %cst_47 : f32 to vector<8x128xf32>
    %234 = arith.addf %233, %232 : vector<8x128xf32>
    %235 = arith.divf %233, %234 : vector<8x128xf32>
    %236 = math.tanh %230 : vector<8x128xf32>
    %237 = vector.extract_strided_slice %235 {offsets = [0, 0], sizes = [8, 32], strides = [1, 1]} : vector<8x128xf32> to vector<8x32xf32>
    %238 = vector.extract_strided_slice %235 {offsets = [0, 32], sizes = [8, 32], strides = [1, 1]} : vector<8x128xf32> to vector<8x32xf32>
    %239 = vector.extract_strided_slice %236 {offsets = [0, 64], sizes = [8, 32], strides = [1, 1]} : vector<8x128xf32> to vector<8x32xf32>
    %240 = vector.extract_strided_slice %235 {offsets = [0, 96], sizes = [8, 32], strides = [1, 1]} : vector<8x128xf32> to vector<8x32xf32>
    %241 = arith.mulf %238, %224 : vector<8x32xf32>
    %242 = arith.mulf %237, %239 : vector<8x32xf32>
    %243 = arith.addf %241, %242 : vector<8x32xf32>
    %244 = math.tanh %243 : vector<8x32xf32>
    %245 = arith.mulf %240, %244 : vector<8x32xf32>
    %246 = vector.extract_strided_slice %167 {offsets = [32, 0], sizes = [8, 128], strides = [1, 1]} : vector<48x128xf32> to vector<8x128xf32>
    %247 = arith.truncf %245 : vector<8x32xf32> to vector<8x32xbf16>
    %cst_48 = arith.constant dense<0.000000e+00> : vector<8x128xf32>
    %248 = tpu.matmul %247, %162, %cst_48 {dimension_numbers = #tpu.dot_dimension_numbers<[1], [0], [0], [1], [0, 0, 1, 1], [], []>} : vector<8x32xbf16>, vector<32x128xbf16>, vector<8x128xf32> -> vector<8x128xf32>
    %249 = arith.addf %246, %248 : vector<8x128xf32>
    %250 = arith.negf %249 : vector<8x128xf32>
    %251 = math.exp %250 : vector<8x128xf32>
    %cst_49 = arith.constant 1.000000e+00 : f32
    %252 = vector.broadcast %cst_49 : f32 to vector<8x128xf32>
    %253 = arith.addf %252, %251 : vector<8x128xf32>
    %254 = arith.divf %252, %253 : vector<8x128xf32>
    %255 = math.tanh %249 : vector<8x128xf32>
    %256 = vector.extract_strided_slice %254 {offsets = [0, 0], sizes = [8, 32], strides = [1, 1]} : vector<8x128xf32> to vector<8x32xf32>
    %257 = vector.extract_strided_slice %254 {offsets = [0, 32], sizes = [8, 32], strides = [1, 1]} : vector<8x128xf32> to vector<8x32xf32>
    %258 = vector.extract_strided_slice %255 {offsets = [0, 64], sizes = [8, 32], strides = [1, 1]} : vector<8x128xf32> to vector<8x32xf32>
    %259 = vector.extract_strided_slice %254 {offsets = [0, 96], sizes = [8, 32], strides = [1, 1]} : vector<8x128xf32> to vector<8x32xf32>
    %260 = arith.mulf %257, %243 : vector<8x32xf32>
    %261 = arith.mulf %256, %258 : vector<8x32xf32>
    %262 = arith.addf %260, %261 : vector<8x32xf32>
    %263 = math.tanh %262 : vector<8x32xf32>
    %264 = arith.mulf %259, %263 : vector<8x32xf32>
    %265 = vector.extract_strided_slice %167 {offsets = [40, 0], sizes = [8, 128], strides = [1, 1]} : vector<48x128xf32> to vector<8x128xf32>
    %266 = arith.truncf %264 : vector<8x32xf32> to vector<8x32xbf16>
    %cst_50 = arith.constant dense<0.000000e+00> : vector<8x128xf32>
    %267 = tpu.matmul %266, %162, %cst_50 {dimension_numbers = #tpu.dot_dimension_numbers<[1], [0], [0], [1], [0, 0, 1, 1], [], []>} : vector<8x32xbf16>, vector<32x128xbf16>, vector<8x128xf32> -> vector<8x128xf32>
    %268 = arith.addf %265, %267 : vector<8x128xf32>
    %269 = arith.negf %268 : vector<8x128xf32>
    %270 = math.exp %269 : vector<8x128xf32>
    %cst_51 = arith.constant 1.000000e+00 : f32
    %271 = vector.broadcast %cst_51 : f32 to vector<8x128xf32>
    %272 = arith.addf %271, %270 : vector<8x128xf32>
    %273 = arith.divf %271, %272 : vector<8x128xf32>
    %274 = math.tanh %268 : vector<8x128xf32>
    %275 = vector.extract_strided_slice %273 {offsets = [0, 0], sizes = [8, 32], strides = [1, 1]} : vector<8x128xf32> to vector<8x32xf32>
    %276 = vector.extract_strided_slice %273 {offsets = [0, 32], sizes = [8, 32], strides = [1, 1]} : vector<8x128xf32> to vector<8x32xf32>
    %277 = vector.extract_strided_slice %274 {offsets = [0, 64], sizes = [8, 32], strides = [1, 1]} : vector<8x128xf32> to vector<8x32xf32>
    %278 = vector.extract_strided_slice %273 {offsets = [0, 96], sizes = [8, 32], strides = [1, 1]} : vector<8x128xf32> to vector<8x32xf32>
    %279 = arith.mulf %276, %262 : vector<8x32xf32>
    %280 = arith.mulf %275, %277 : vector<8x32xf32>
    %281 = arith.addf %279, %280 : vector<8x32xf32>
    %282 = math.tanh %281 : vector<8x32xf32>
    %283 = arith.mulf %278, %282 : vector<8x32xf32>
    %284 = arith.truncf %160 : vector<8x32xf32> to vector<8x32xbf16>
    %c0_52 = arith.constant 0 : index
    %c0_53 = arith.constant 0 : index
    %285 = vector.load %arg12[%c0_52, %c0_53] : memref<32x128xbf16, #tpu.memory_space<vmem>>, vector<32x128xbf16>
    %cst_54 = arith.constant dense<0.000000e+00> : vector<8x128xf32>
    %286 = tpu.matmul %284, %285, %cst_54 {dimension_numbers = #tpu.dot_dimension_numbers<[1], [0], [0], [1], [0, 0, 1, 1], [], []>} : vector<8x32xbf16>, vector<32x128xbf16>, vector<8x128xf32> -> vector<8x128xf32>
    %287 = arith.truncf %283 : vector<8x32xf32> to vector<8x32xbf16>
    %c0_55 = arith.constant 0 : index
    %c0_56 = arith.constant 0 : index
    %288 = vector.load %arg13[%c0_55, %c0_56] : memref<32x128xbf16, #tpu.memory_space<vmem>>, vector<32x128xbf16>
    %cst_57 = arith.constant dense<0.000000e+00> : vector<8x128xf32>
    %289 = tpu.matmul %287, %288, %cst_57 {dimension_numbers = #tpu.dot_dimension_numbers<[1], [0], [0], [1], [0, 0, 1, 1], [], []>} : vector<8x32xbf16>, vector<32x128xbf16>, vector<8x128xf32> -> vector<8x128xf32>
    %290 = arith.addf %286, %289 : vector<8x128xf32>
    %c0_58 = arith.constant 0 : index
    %c0_59 = arith.constant 0 : index
    %291 = vector.load %arg14[%c0_58, %c0_59] : memref<1x128xf32, #tpu.memory_space<vmem>>, vector<1x128xf32>
    %292 = vector.broadcast %291 : vector<1x128xf32> to vector<8x128xf32>
    %293 = arith.addf %290, %292 : vector<8x128xf32>
    %294 = tpu.iota {dimensions = array<i32: 1>} : vector<8x128xi32>
    %c3_i32 = arith.constant 3 : i32
    %295 = vector.broadcast %c3_i32 : i32 to vector<8x128xi32>
    %296 = arith.cmpi slt, %294, %295 : vector<8x128xi32>
    %cst_60 = arith.constant -1.000000e+30 : f32
    %297 = vector.broadcast %cst_60 : f32 to vector<8x128xf32>
    %298 = arith.select %296, %293, %297 : vector<8x128xi1>, vector<8x128xf32>
    %cst_61 = arith.constant dense<0xFF800000> : vector<8xf32>
    %299 = vector.multi_reduction <maximumf>, %298, %cst_61 [1] : vector<8x128xf32> to vector<8xf32>
    %300 = vector.shape_cast %299 : vector<8xf32> to vector<8x1xf32>
    %301 = vector.broadcast %300 : vector<8x1xf32> to vector<8x128xf32>
    %302 = arith.subf %293, %301 : vector<8x128xf32>
    %303 = math.exp %302 : vector<8x128xf32>
    %cst_62 = arith.constant 0.000000e+00 : f32
    %304 = vector.broadcast %cst_62 : f32 to vector<8x128xf32>
    %305 = arith.select %296, %303, %304 : vector<8x128xi1>, vector<8x128xf32>
    %cst_63 = arith.constant dense<0.000000e+00> : vector<8xf32>
    %306 = vector.multi_reduction <add>, %305, %cst_63 [1] : vector<8x128xf32> to vector<8xf32>
    %307 = vector.shape_cast %306 : vector<8xf32> to vector<8x1xf32>
    %308 = vector.broadcast %307 : vector<8x1xf32> to vector<8x128xf32>
    %309 = arith.divf %305, %308 : vector<8x128xf32>
    %c0_64 = arith.constant 0 : index
    %c0_65 = arith.constant 0 : index
    %310 = vector.load %arg15[%c0_64, %c0_65] : memref<8x128xf32, #tpu.memory_space<vmem>>, vector<8x128xf32>
    tpu.vector_store %arg15[%c0_64, %c0_65], %309 {strides = array<i32>} : memref<8x128xf32, #tpu.memory_space<vmem>>, vector<8x128xf32>,
    return
  }
}

</mosaic_0001>

<llo_original>
// kernel: target_rnn_forward.1
$region0: #{target_rnn_forward.1}
  #allocation0 [shape = 'u32[]', space=smem, size = 0x4, offset = 0x4, fixed_abs, tag = 'smem constant byte address 0x4 - core index']
  #allocation1 [shape = 'u32[144,128]{1,0:T(1,128)}', space=vmem, size = 0x12000, scoped, tag = 'internal scratch']
  %s0 = inlined_call_operand.vmem [shape: bf16[64,32], index: 0, kind: input, shape index: {}]
  %s1 = inlined_call_operand.vmem [shape: bf16[48,32], index: 1, kind: input, shape index: {}]
  %s2 = inlined_call_operand.vmem [shape: bf16[32,128], index: 2, kind: input, shape index: {}]
  %s3 = inlined_call_operand.vmem [shape: bf16[32,128], index: 3, kind: input, shape index: {}]
  %s4 = inlined_call_operand.vmem [shape: f32[1,128], index: 4, kind: input, shape index: {}]
  %s5 = inlined_call_operand.vmem [shape: bf16[32,128], index: 5, kind: input, shape index: {}]
  %s6 = inlined_call_operand.vmem [shape: bf16[32,128], index: 6, kind: input, shape index: {}]
  %s7 = inlined_call_operand.vmem [shape: f32[1,128], index: 7, kind: input, shape index: {}]
  %s8 = inlined_call_operand.vmem [shape: f32[8,32], index: 8, kind: input, shape index: {}]
  %s9 = inlined_call_operand.vmem [shape: f32[8,32], index: 9, kind: input, shape index: {}]
  %s10 = inlined_call_operand.vmem [shape: f32[8,32], index: 10, kind: input, shape index: {}]
  %s11 = inlined_call_operand.vmem [shape: f32[8,32], index: 11, kind: input, shape index: {}]
  %s12 = inlined_call_operand.vmem [shape: bf16[32,128], index: 12, kind: input, shape index: {}]
  %s13 = inlined_call_operand.vmem [shape: bf16[32,128], index: 13, kind: input, shape index: {}]
  %s14 = inlined_call_operand.vmem [shape: f32[1,128], index: 14, kind: input, shape index: {}]
  %s15 = inlined_call_operand.vmem [shape: f32[8,128], index: 15, kind: output, shape index: {}]
  %s16 = sld [smem:[#allocation0]]
  $region70: #{target_rnn_forward.1} parent=0
    _
  %s18 = ssub.s32 1, %s16
  %s19 = scalar_select 0, %s18, %s16
  // Predicated region
  $region2: #{target_rnn_forward.1} parent=0 // pred_check
    _
  $region3: #{target_rnn_forward.1} parent=0 // pred_check_branch
    %21 = sbr.rel (0) target = $region5
  $region4: #{target_rnn_forward.1} parent=0 // pred_region
    _
  $region5: #{target_rnn_forward.1} parent=0 // pred_fallthru
    _
  // Predicated region
  $region6: #{target_rnn_forward.1} parent=0 // pred_check
    _
  $region7: #{target_rnn_forward.1} parent=0 // pred_check_branch
    %23 = sbr.rel (0) target = $region9
  $region8: #{target_rnn_forward.1} parent=0 // pred_region
    _
  $region9: #{target_rnn_forward.1} parent=0 // pred_fallthru
    _
  // Predicated region
  $region10: #{target_rnn_forward.1} parent=0 // pred_check
    _
  $region11: #{target_rnn_forward.1} parent=0 // pred_check_branch
    %25 = sbr.rel (0) target = $region13
  $region12: #{target_rnn_forward.1} parent=0 // pred_region
    _
  $region13: #{target_rnn_forward.1} parent=0 // pred_fallthru
    _
  // Predicated region
  $region14: #{target_rnn_forward.1} parent=0 // pred_check
    _
  $region15: #{target_rnn_forward.1} parent=0 // pred_check_branch
    %27 = sbr.rel (0) target = $region17
  $region16: #{target_rnn_forward.1} parent=0 // pred_region
    _
  $region17: #{target_rnn_forward.1} parent=0 // pred_fallthru
    _
  // Predicated region
  $region18: #{target_rnn_forward.1} parent=0 // pred_check
    _
  $region19: #{target_rnn_forward.1} parent=0 // pred_check_branch
    %29 = sbr.rel (0) target = $region21
  $region20: #{target_rnn_forward.1} parent=0 // pred_region
    _
  $region21: #{target_rnn_forward.1} parent=0 // pred_fallthru
    _
  // Predicated region
  $region22: #{target_rnn_forward.1} parent=0 // pred_check
    _
  $region23: #{target_rnn_forward.1} parent=0 // pred_check_branch
    %31 = sbr.rel (0) target = $region25
  $region24: #{target_rnn_forward.1} parent=0 // pred_region
    _
  $region25: #{target_rnn_forward.1} parent=0 // pred_fallthru
    _
  // Predicated region
  $region26: #{target_rnn_forward.1} parent=0 // pred_check
    _
  $region27: #{target_rnn_forward.1} parent=0 // pred_check_branch
    %33 = sbr.rel (0) target = $region29
  $region28: #{target_rnn_forward.1} parent=0 // pred_region
    _
  $region29: #{target_rnn_forward.1} parent=0 // pred_fallthru
    _
  // Predicated region
  $region30: #{target_rnn_forward.1} parent=0 // pred_check
    _
  $region31: #{target_rnn_forward.1} parent=0 // pred_check_branch
    %35 = sbr.rel (0) target = $region33
  $region32: #{target_rnn_forward.1} parent=0 // pred_region
    _
  $region33: #{target_rnn_forward.1} parent=0 // pred_fallthru
    _
  // Predicated region
  $region34: #{target_rnn_forward.1} parent=0 // pred_check
    _
  $region35: #{target_rnn_forward.1} parent=0 // pred_check_branch
    %37 = sbr.rel (0) target = $region37
  $region36: #{target_rnn_forward.1} parent=0 // pred_region
    _
  $region37: #{target_rnn_forward.1} parent=0 // pred_fallthru
    _
  // Predicated region
  $region38: #{target_rnn_forward.1} parent=0 // pred_check
    _
  $region39: #{target_rnn_forward.1} parent=0 // pred_check_branch
    %39 = sbr.rel (0) target = $region41
  $region40: #{target_rnn_forward.1} parent=0 // pred_region
    _
  $region41: #{target_rnn_forward.1} parent=0 // pred_fallthru
    _
  // Predicated region
  $region42: #{target_rnn_forward.1} parent=0 // pred_check
    _
  $region43: #{target_rnn_forward.1} parent=0 // pred_check_branch
    %41 = sbr.rel (0) target = $region45
  $region44: #{target_rnn_forward.1} parent=0 // pred_region
    _
  $region45: #{target_rnn_forward.1} parent=0 // pred_fallthru
    _
  // Predicated region
  $region46: #{target_rnn_forward.1} parent=0 // pred_check
    _
  $region47: #{target_rnn_forward.1} parent=0 // pred_check_branch
    %43 = sbr.rel (0) target = $region49
  $region48: #{target_rnn_forward.1} parent=0 // pred_region
    _
  $region49: #{target_rnn_forward.1} parent=0 // pred_fallthru
    _
  // Predicated region
  $region50: #{target_rnn_forward.1} parent=0 // pred_check
    _
  $region51: #{target_rnn_forward.1} parent=0 // pred_check_branch
    %45 = sbr.rel (0) target = $region53
  $region52: #{target_rnn_forward.1} parent=0 // pred_region
    _
  $region53: #{target_rnn_forward.1} parent=0 // pred_fallthru
    _
  // Predicated region
  $region54: #{target_rnn_forward.1} parent=0 // pred_check
    _
  $region55: #{target_rnn_forward.1} parent=0 // pred_check_branch
    %47 = sbr.rel (0) target = $region57
  $region56: #{target_rnn_forward.1} parent=0 // pred_region
    _
  $region57: #{target_rnn_forward.1} parent=0 // pred_fallthru
    _
  // Predicated region
  $region58: #{target_rnn_forward.1} parent=0 // pred_check
    _
  $region59: #{target_rnn_forward.1} parent=0 // pred_check_branch
    %49 = sbr.rel (0) target = $region61
  $region60: #{target_rnn_forward.1} parent=0 // pred_region
    _
  $region61: #{target_rnn_forward.1} parent=0 // pred_fallthru
    _
  %v51 = vld [vmem:[%s2] sm:$0xf]
  %v52 = vld [vmem:[%s2 + $0x4] sm:$0xf]
  %v53 = vld [vmem:[%s2 + $0x8] sm:$0xf]
  %v54 = vld [vmem:[%s2 + $0xc] sm:$0xf]
  %v55 = vld [vmem:[%s3] sm:$0xf]
  %v56 = vld [vmem:[%s3 + $0x4] sm:$0xf]
  %v57 = vld [vmem:[%s3 + $0x8] sm:$0xf]
  %v58 = vld [vmem:[%s3 + $0xc] sm:$0xf]
  %v59 = vld [vmem:[%s0] sm:$0xf]
  %v60 = vld [vmem:[%s0 + $0x4] sm:$0xf]
  %v61 = vld [vmem:[%s0 + $0x8] sm:$0xf]
  %v62 = vld [vmem:[%s0 + $0xc] sm:$0xf]
  %v63 = vld [vmem:[%s0 + $0x10] sm:$0xf]
  %v64 = vld [vmem:[%s0 + $0x14] sm:$0xf]
  %v65 = vld [vmem:[%s0 + $0x18] sm:$0xf]
  %v66 = vld [vmem:[%s0 + $0x1c] sm:$0xf]
  %v67 = vld [vmem:[%s4] sm:$0x1]
  %v69 = vlaneseq
  %v70 = vshrl.u32 %v69, 7
  %v71 = vsub.s32 0, %v70
  %v72 = vrot.slane %v67, %v71
  %v82 = vunpack.c.l.b16 %v59
  %v83 = vunpack.c.l.b16 %v60
  %v84 = vunpack.c.l.b16 %v61
  %v85 = vunpack.c.l.b16 %v62
  %v86 = vunpack.c.l.b16 %v63
  %v87 = vunpack.c.l.b16 %v64
  %v88 = vunpack.c.l.b16 %v65
  %v89 = vunpack.c.l.b16 %v66
  %v90 = vpack.c.b16 %v83, %v82
  %v91 = vpack.c.b16 %v85, %v84
  %v92 = vpack.c.b16 %v87, %v86
  %v93 = vpack.c.b16 %v89, %v88
  %v98 = vunpack.c.l.b16 %v51
  %v99 = vunpack.c.l.b16 %v52
  %v100 = vunpack.c.l.b16 %v53
  %v101 = vunpack.c.l.b16 %v54
  %v102 = vpack.c.b16 %v99, %v98
  %v103 = vpack.c.b16 %v101, %v100
  %vm106 = vcmask 261120
  %v108 = vsel %vm106, %v90, 0
  %v111 = vsel %vm106, %v91, 0
  %v114 = vsel %vm106, %v92, 0
  %v117 = vsel %vm106, %v93, 0
  %119 = vmatprep.subr.bf16.mxu0 0
  %120 = vmatpush1.bf16.msra.mxu0 %v102
  %121 = vmatprep.subr.bf16.mxu0 0
  %122 = vmatpush1.bf16.msra.mxu0 %v103
  %123 = vmatprep.subr.bf16.mxu0 0
  %124 = vmatpush1.bf16.msra.mxu0 0
  %125 = vmatprep.subr.bf16.mxu0 0
  %126 = vmatpush1.bf16.msra.mxu0 0
  %127 = vmatprep.subr.bf16.mxu0 0
  %128 = vmatpush1.bf16.msra.mxu0 0
  %129 = vmatprep.subr.bf16.mxu0 0
  %130 = vmatpush1.bf16.msra.mxu0 0
  %131 = vmatprep.subr.bf16.mxu0 0
  %132 = vmatpush1.bf16.msra.mxu0 0
  %133 = vmatprep.subr.bf16.mxu0 0
  %134 = vmatpush1.bf16.msra.mxu0 0
  %135 = vmatprep.subr.bf16.mxu0 0
  %136 = vmatpush1.bf16.msra.mxu0 0
  %137 = vmatprep.subr.bf16.mxu0 0
  %138 = vmatpush1.bf16.msra.mxu0 0
  %139 = vmatprep.subr.bf16.mxu0 0
  %140 = vmatpush1.bf16.msra.mxu0 0
  %141 = vmatprep.subr.bf16.mxu0 0
  %142 = vmatpush1.bf16.msra.mxu0 0
  %143 = vmatprep.subr.bf16.mxu0 0
  %144 = vmatpush1.bf16.msra.mxu0 0
  %145 = vmatprep.subr.bf16.mxu0 0
  %146 = vmatpush1.bf16.msra.mxu0 0
  %147 = vmatprep.subr.bf16.mxu0 0
  %148 = vmatpush1.bf16.msra.mxu0 0
  %149 = vmatprep.subr.bf16.mxu0 0
  %150 = vmatpush1.bf16.msra.mxu0 0
  %151 = vmatprep.mubr.bf16.mxu0 0
  %152 = vmatmul.mubr.bf16.gmra.mrb[0].mxu0 %v108
  %v153 = vpop.f32.mrb[0].mxu0
  %v154 = vadd.f32 %v72, %v153
  %v155 = vpop.f32.mrb[0].mxu0
  %v156 = vpop.f32.mrb[0].mxu0
  %v157 = vadd.f32 %v72, %v156
  %v158 = vpop.f32.mrb[0].mxu0
  %159 = vmatprep.mubr.bf16.mxu0 0
  %160 = vmatmul.mubr.bf16.gmra.mrb[0].mxu0 %v111
  %v161 = vpop.f32.mrb[0].mxu0
  %v162 = vadd.f32 %v72, %v161
  %v163 = vpop.f32.mrb[0].mxu0
  %v164 = vpop.f32.mrb[0].mxu0
  %v165 = vadd.f32 %v72, %v164
  %v166 = vpop.f32.mrb[0].mxu0
  %167 = vmatprep.mubr.bf16.mxu0 0
  %168 = vmatmul.mubr.bf16.gmra.mrb[0].mxu0 %v114
  %v169 = vpop.f32.mrb[0].mxu0
  %v170 = vadd.f32 %v72, %v169
  %v171 = vpop.f32.mrb[0].mxu0
  %v172 = vpop.f32.mrb[0].mxu0
  %v173 = vadd.f32 %v72, %v172
  %v174 = vpop.f32.mrb[0].mxu0
  %175 = vmatprep.mubr.bf16.mxu0 0
  %176 = vmatmul.mubr.bf16.gmra.mrb[0].mxu0 %v117
  %v177 = vpop.f32.mrb[0].mxu0
  %v178 = vadd.f32 %v72, %v177
  %v179 = vpop.f32.mrb[0].mxu0
  %v180 = vpop.f32.mrb[0].mxu0
  %v181 = vadd.f32 %v72, %v180
  %v182 = vpop.f32.mrb[0].mxu0
  %183 = vdwg.mxu0
  %v184 = vld [vmem:[%s8] sm:$0xff]
  %v185 = vld [vmem:[%s9] sm:$0xff]
  %v186 = vpack.c.bf16 %v184, %v184
  %v191 = vunpack.c.l.b16 %v55
  %v192 = vunpack.c.l.b16 %v56
  %v193 = vunpack.c.l.b16 %v57
  %v194 = vunpack.c.l.b16 %v58
  %v195 = vpack.c.b16 %v192, %v191
  %v196 = vpack.c.b16 %v194, %v193
  %v200 = vsel %vm106, %v186, 0
  %202 = vmatprep.subr.bf16.mxu0 0
  %203 = vmatpush1.bf16.msra.mxu0 %v195
  %204 = vmatprep.subr.bf16.mxu0 0
  %205 = vmatpush1.bf16.msra.mxu0 %v196
  %206 = vmatprep.subr.bf16.mxu0 0
  %207 = vmatpush1.bf16.msra.mxu0 0
  %208 = vmatprep.subr.bf16.mxu0 0
  %209 = vmatpush1.bf16.msra.mxu0 0
  %210 = vmatprep.subr.bf16.mxu0 0
  %211 = vmatpush1.bf16.msra.mxu0 0
  %212 = vmatprep.subr.bf16.mxu0 0
  %213 = vmatpush1.bf16.msra.mxu0 0
  %214 = vmatprep.subr.bf16.mxu0 0
  %215 = vmatpush1.bf16.msra.mxu0 0
  %216 = vmatprep.subr.bf16.mxu0 0
  %217 = vmatpush1.bf16.msra.mxu0 0
  %218 = vmatprep.subr.bf16.mxu0 0
  %219 = vmatpush1.bf16.msra.mxu0 0
  %220 = vmatprep.subr.bf16.mxu0 0
  %221 = vmatpush1.bf16.msra.mxu0 0
  %222 = vmatprep.subr.bf16.mxu0 0
  %223 = vmatpush1.bf16.msra.mxu0 0
  %224 = vmatprep.subr.bf16.mxu0 0
  %225 = vmatpush1.bf16.msra.mxu0 0
  %226 = vmatprep.subr.bf16.mxu0 0
  %227 = vmatpush1.bf16.msra.mxu0 0
  %228 = vmatprep.subr.bf16.mxu0 0
  %229 = vmatpush1.bf16.msra.mxu0 0
  %230 = vmatprep.subr.bf16.mxu0 0
  %231 = vmatpush1.bf16.msra.mxu0 0
  %232 = vmatprep.subr.bf16.mxu0 0
  %233 = vmatpush1.bf16.msra.mxu0 0
  %234 = vmatprep.mubr.bf16.mxu0 0
  %235 = vmatmul.mubr.bf16.gmra.mrb[0].mxu0 %v200
  %v236 = vpop.f32.mrb[0].mxu0
  %v237 = vadd.f32 0.0, %v236
  %v238 = vpop.f32.mrb[0].mxu0
  %v239 = vpop.f32.mrb[0].mxu0
  %v240 = vpop.f32.mrb[0].mxu0
  %241 = vdwg.mxu0
  %v242 = vadd.f32 %v154, %v237
  %v243 = vxor.u32 %v242, 2147483648
  %v244 = vmul.f32 %v243, 1.442695
  %v245 = vpow.pop %v244
  %v246 = vadd.f32 %v245, 1.0
  %v247 = vrcp.pop %v246
  %v248 = vmul.f32 1.0, %v247
  %v249 = vtanh.pop %v242
  %251 = vrot.lane.b32.xlu0 %v185, 32
  %v252 = vpop.permute.xlu0 %251
  %v254 = vmul.f32 %v248, %v252
  %256 = vrot.lane.b32.xlu0 %v249, 64
  %v257 = vpop.permute.xlu0 %256
  %v259 = vmul.f32 %v248, %v257
  %261 = vrot.lane.b32.xlu0 %v259, 32
  %v262 = vpop.permute.xlu0 %261
  %v264 = vadd.f32 %v254, %v262
  %v265 = vtanh.pop %v264
  %267 = vrot.lane.b32.xlu0 %v265, 64
  %v268 = vpop.permute.xlu0 %267
  %v270 = vmul.f32 %v248, %v268
  %v271 = vpack.c.bf16 %v270, %v270
  %273 = vrot.lane.b32.xlu0 %v271, 32
  %v274 = vpop.permute.xlu0 %273
  %v276 = vsel %vm106, %v274, 0
  %278 = vmatprep.subr.bf16.mxu0 0
  %279 = vmatpush1.bf16.msra.mxu0 %v195
  %280 = vmatprep.subr.bf16.mxu0 0
  %281 = vmatpush1.bf16.msra.mxu0 %v196
  %282 = vmatprep.subr.bf16.mxu0 0
  %283 = vmatpush1.bf16.msra.mxu0 0
  %284 = vmatprep.subr.bf16.mxu0 0
  %285 = vmatpush1.bf16.msra.mxu0 0
  %286 = vmatprep.subr.bf16.mxu0 0
  %287 = vmatpush1.bf16.msra.mxu0 0
  %288 = vmatprep.subr.bf16.mxu0 0
  %289 = vmatpush1.bf16.msra.mxu0 0
  %290 = vmatprep.subr.bf16.mxu0 0
  %291 = vmatpush1.bf16.msra.mxu0 0
  %292 = vmatprep.subr.bf16.mxu0 0
  %293 = vmatpush1.bf16.msra.mxu0 0
  %294 = vmatprep.subr.bf16.mxu0 0
  %295 = vmatpush1.bf16.msra.mxu0 0
  %296 = vmatprep.subr.bf16.mxu0 0
  %297 = vmatpush1.bf16.msra.mxu0 0
  %298 = vmatprep.subr.bf16.mxu0 0
  %299 = vmatpush1.bf16.msra.mxu0 0
  %300 = vmatprep.subr.bf16.mxu0 0
  %301 = vmatpush1.bf16.msra.mxu0 0
  %302 = vmatprep.subr.bf16.mxu0 0
  %303 = vmatpush1.bf16.msra.mxu0 0
  %304 = vmatprep.subr.bf16.mxu0 0
  %305 = vmatpush1.bf16.msra.mxu0 0
  %306 = vmatprep.subr.bf16.mxu0 0
  %307 = vmatpush1.bf16.msra.mxu0 0
  %308 = vmatprep.subr.bf16.mxu0 0
  %309 = vmatpush1.bf16.msra.mxu0 0
  %310 = vmatprep.mubr.bf16.mxu0 0
  %311 = vmatmul.mubr.bf16.gmra.mrb[0].mxu0 %v276
  %v312 = vpop.f32.mrb[0].mxu0
  %v313 = vadd.f32 0.0, %v312
  %v314 = vpop.f32.mrb[0].mxu0
  %v315 = vpop.f32.mrb[0].mxu0
  %v316 = vpop.f32.mrb[0].mxu0
  %317 = vdwg.mxu0
  %v318 = vadd.f32 %v157, %v313
  %v319 = vxor.u32 %v318, 2147483648
  %v320 = vmul.f32 %v319, 1.442695
  %v321 = vpow.pop %v320
  %v322 = vadd.f32 %v321, 1.0
  %v323 = vrcp.pop %v322
  %v324 = vmul.f32 1.0, %v323
  %v325 = vtanh.pop %v318
  %v326 = vmul.f32 %v324, %v264
  %328 = vrot.lane.b32.xlu0 %v325, 64
  %v329 = vpop.permute.xlu0 %328
  %v331 = vmul.f32 %v324, %v329
  %333 = vrot.lane.b32.xlu0 %v331, 32
  %v334 = vpop.permute.xlu0 %333
  %v336 = vadd.f32 %v326, %v334
  %v337 = vtanh.pop %v336
  %339 = vrot.lane.b32.xlu0 %v337, 64
  %v340 = vpop.permute.xlu0 %339
  %v342 = vmul.f32 %v324, %v340
  %v343 = vpack.c.bf16 %v342, %v342
  %345 = vrot.lane.b32.xlu0 %v343, 32
  %v346 = vpop.permute.xlu0 %345
  %v348 = vsel %vm106, %v346, 0
  %350 = vmatprep.subr.bf16.mxu0 0
  %351 = vmatpush1.bf16.msra.mxu0 %v195
  %352 = vmatprep.subr.bf16.mxu0 0
  %353 = vmatpush1.bf16.msra.mxu0 %v196
  %354 = vmatprep.subr.bf16.mxu0 0
  %355 = vmatpush1.bf16.msra.mxu0 0
  %356 = vmatprep.subr.bf16.mxu0 0
  %357 = vmatpush1.bf16.msra.mxu0 0
  %358 = vmatprep.subr.bf16.mxu0 0
  %359 = vmatpush1.bf16.msra.mxu0 0
  %360 = vmatprep.subr.bf16.mxu0 0
  %361 = vmatpush1.bf16.msra.mxu0 0
  %362 = vmatprep.subr.bf16.mxu0 0
  %363 = vmatpush1.bf16.msra.mxu0 0
  %364 = vmatprep.subr.bf16.mxu0 0
  %365 = vmatpush1.bf16.msra.mxu0 0
  %366 = vmatprep.subr.bf16.mxu0 0
  %367 = vmatpush1.bf16.msra.mxu0 0
  %368 = vmatprep.subr.bf16.mxu0 0
  %369 = vmatpush1.bf16.msra.mxu0 0
  %370 = vmatprep.subr.bf16.mxu0 0
  %371 = vmatpush1.bf16.msra.mxu0 0
  %372 = vmatprep.subr.bf16.mxu0 0
  %373 = vmatpush1.bf16.msra.mxu0 0
  %374 = vmatprep.subr.bf16.mxu0 0
  %375 = vmatpush1.bf16.msra.mxu0 0
  %376 = vmatprep.subr.bf16.mxu0 0
  %377 = vmatpush1.bf16.msra.mxu0 0
  %378 = vmatprep.subr.bf16.mxu0 0
  %379 = vmatpush1.bf16.msra.mxu0 0
  %380 = vmatprep.subr.bf16.mxu0 0
  %381 = vmatpush1.bf16.msra.mxu0 0
  %382 = vmatprep.mubr.bf16.mxu0 0
  %383 = vmatmul.mubr.bf16.gmra.mrb[0].mxu0 %v348
  %v384 = vpop.f32.mrb[0].mxu0
  %v385 = vadd.f32 0.0, %v384
  %v386 = vpop.f32.mrb[0].mxu0
  %v387 = vpop.f32.mrb[0].mxu0
  %v388 = vpop.f32.mrb[0].mxu0
  %389 = vdwg.mxu0
  %v390 = vadd.f32 %v162, %v385
  %v391 = vxor.u32 %v390, 2147483648
  %v392 = vmul.f32 %v391, 1.442695
  %v393 = vpow.pop %v392
  %v394 = vadd.f32 %v393, 1.0
  %v395 = vrcp.pop %v394
  %v396 = vmul.f32 1.0, %v395
  %v397 = vtanh.pop %v390
  %v398 = vmul.f32 %v396, %v336
  %400 = vrot.lane.b32.xlu0 %v397, 64
  %v401 = vpop.permute.xlu0 %400
  %v403 = vmul.f32 %v396, %v401
  %405 = vrot.lane.b32.xlu0 %v403, 32
  %v406 = vpop.permute.xlu0 %405
  %v408 = vadd.f32 %v398, %v406
  %v409 = vtanh.pop %v408
  %411 = vrot.lane.b32.xlu0 %v409, 64
  %v412 = vpop.permute.xlu0 %411
  %v414 = vmul.f32 %v396, %v412
  %v415 = vpack.c.bf16 %v414, %v414
  %417 = vrot.lane.b32.xlu0 %v415, 32
  %v418 = vpop.permute.xlu0 %417
  %v420 = vsel %vm106, %v418, 0
  %422 = vmatprep.subr.bf16.mxu0 0
  %423 = vmatpush1.bf16.msra.mxu0 %v195
  %424 = vmatprep.subr.bf16.mxu0 0
  %425 = vmatpush1.bf16.msra.mxu0 %v196
  %426 = vmatprep.subr.bf16.mxu0 0
  %427 = vmatpush1.bf16.msra.mxu0 0
  %428 = vmatprep.subr.bf16.mxu0 0
  %429 = vmatpush1.bf16.msra.mxu0 0
  %430 = vmatprep.subr.bf16.mxu0 0
  %431 = vmatpush1.bf16.msra.mxu0 0
  %432 = vmatprep.subr.bf16.mxu0 0
  %433 = vmatpush1.bf16.msra.mxu0 0
  %434 = vmatprep.subr.bf16.mxu0 0
  %435 = vmatpush1.bf16.msra.mxu0 0
  %436 = vmatprep.subr.bf16.mxu0 0
  %437 = vmatpush1.bf16.msra.mxu0 0
  %438 = vmatprep.subr.bf16.mxu0 0
  %439 = vmatpush1.bf16.msra.mxu0 0
  %440 = vmatprep.subr.bf16.mxu0 0
  %441 = vmatpush1.bf16.msra.mxu0 0
  %442 = vmatprep.subr.bf16.mxu0 0
  %443 = vmatpush1.bf16.msra.mxu0 0
  %444 = vmatprep.subr.bf16.mxu0 0
  %445 = vmatpush1.bf16.msra.mxu0 0
  %446 = vmatprep.subr.bf16.mxu0 0
  %447 = vmatpush1.bf16.msra.mxu0 0
  %448 = vmatprep.subr.bf16.mxu0 0
  %449 = vmatpush1.bf16.msra.mxu0 0
  %450 = vmatprep.subr.bf16.mxu0 0
  %451 = vmatpush1.bf16.msra.mxu0 0
  %452 = vmatprep.subr.bf16.mxu0 0
  %453 = vmatpush1.bf16.msra.mxu0 0
  %454 = vmatprep.mubr.bf16.mxu0 0
  %455 = vmatmul.mubr.bf16.gmra.mrb[0].mxu0 %v420
  %v456 = vpop.f32.mrb[0].mxu0
  %v457 = vadd.f32 0.0, %v456
  %v458 = vpop.f32.mrb[0].mxu0
  %v459 = vpop.f32.mrb[0].mxu0
  %v460 = vpop.f32.mrb[0].mxu0
  %461 = vdwg.mxu0
  %v462 = vadd.f32 %v165, %v457
  %v463 = vxor.u32 %v462, 2147483648
  %v464 = vmul.f32 %v463, 1.442695
  %v465 = vpow.pop %v464
  %v466 = vadd.f32 %v465, 1.0
  %v467 = vrcp.pop %v466
  %v468 = vmul.f32 1.0, %v467
  %v469 = vtanh.pop %v462
  %v470 = vmul.f32 %v468, %v408
  %472 = vrot.lane.b32.xlu0 %v469, 64
  %v473 = vpop.permute.xlu0 %472
  %v475 = vmul.f32 %v468, %v473
  %477 = vrot.lane.b32.xlu0 %v475, 32
  %v478 = vpop.permute.xlu0 %477
  %v480 = vadd.f32 %v470, %v478
  %v481 = vtanh.pop %v480
  %483 = vrot.lane.b32.xlu0 %v481, 64
  %v484 = vpop.permute.xlu0 %483
  %v486 = vmul.f32 %v468, %v484
  %v487 = vpack.c.bf16 %v486, %v486
  %489 = vrot.lane.b32.xlu0 %v487, 32
  %v490 = vpop.permute.xlu0 %489
  %v492 = vsel %vm106, %v490, 0
  %494 = vmatprep.subr.bf16.mxu0 0
  %495 = vmatpush1.bf16.msra.mxu0 %v195
  %496 = vmatprep.subr.bf16.mxu0 0
  %497 = vmatpush1.bf16.msra.mxu0 %v196
  %498 = vmatprep.subr.bf16.mxu0 0
  %499 = vmatpush1.bf16.msra.mxu0 0
  %500 = vmatprep.subr.bf16.mxu0 0
  %501 = vmatpush1.bf16.msra.mxu0 0
  %502 = vmatprep.subr.bf16.mxu0 0
  %503 = vmatpush1.bf16.msra.mxu0 0
  %504 = vmatprep.subr.bf16.mxu0 0
  %505 = vmatpush1.bf16.msra.mxu0 0
  %506 = vmatprep.subr.bf16.mxu0 0
  %507 = vmatpush1.bf16.msra.mxu0 0
  %508 = vmatprep.subr.bf16.mxu0 0
  %509 = vmatpush1.bf16.msra.mxu0 0
  %510 = vmatprep.subr.bf16.mxu0 0
  %511 = vmatpush1.bf16.msra.mxu0 0
  %512 = vmatprep.subr.bf16.mxu0 0
  %513 = vmatpush1.bf16.msra.mxu0 0
  %514 = vmatprep.subr.bf16.mxu0 0
  %515 = vmatpush1.bf16.msra.mxu0 0
  %516 = vmatprep.subr.bf16.mxu0 0
  %517 = vmatpush1.bf16.msra.mxu0 0
  %518 = vmatprep.subr.bf16.mxu0 0
  %519 = vmatpush1.bf16.msra.mxu0 0
  %520 = vmatprep.subr.bf16.mxu0 0
  %521 = vmatpush1.bf16.msra.mxu0 0
  %522 = vmatprep.subr.bf16.mxu0 0
  %523 = vmatpush1.bf16.msra.mxu0 0
  %524 = vmatprep.subr.bf16.mxu0 0
  %525 = vmatpush1.bf16.msra.mxu0 0
  %526 = vmatprep.mubr.bf16.mxu0 0
  %527 = vmatmul.mubr.bf16.gmra.mrb[0].mxu0 %v492
  %v528 = vpop.f32.mrb[0].mxu0
  %v529 = vadd.f32 0.0, %v528
  %v530 = vpop.f32.mrb[0].mxu0
  %v531 = vpop.f32.mrb[0].mxu0
  %v532 = vpop.f32.mrb[0].mxu0
  %533 = vdwg.mxu0
  %v534 = vadd.f32 %v170, %v529
  %v535 = vxor.u32 %v534, 2147483648
  %v536 = vmul.f32 %v535, 1.442695
  %v537 = vpow.pop %v536
  %v538 = vadd.f32 %v537, 1.0
  %v539 = vrcp.pop %v538
  %v540 = vmul.f32 1.0, %v539
  %v541 = vtanh.pop %v534
  %v542 = vmul.f32 %v540, %v480
  %544 = vrot.lane.b32.xlu0 %v541, 64
  %v545 = vpop.permute.xlu0 %544
  %v547 = vmul.f32 %v540, %v545
  %549 = vrot.lane.b32.xlu0 %v547, 32
  %v550 = vpop.permute.xlu0 %549
  %v552 = vadd.f32 %v542, %v550
  %v553 = vtanh.pop %v552
  %555 = vrot.lane.b32.xlu0 %v553, 64
  %v556 = vpop.permute.xlu0 %555
  %v558 = vmul.f32 %v540, %v556
  %v559 = vpack.c.bf16 %v558, %v558
  %561 = vrot.lane.b32.xlu0 %v559, 32
  %v562 = vpop.permute.xlu0 %561
  %v564 = vsel %vm106, %v562, 0
  %566 = vmatprep.subr.bf16.mxu0 0
  %567 = vmatpush1.bf16.msra.mxu0 %v195
  %568 = vmatprep.subr.bf16.mxu0 0
  %569 = vmatpush1.bf16.msra.mxu0 %v196
  %570 = vmatprep.subr.bf16.mxu0 0
  %571 = vmatpush1.bf16.msra.mxu0 0
  %572 = vmatprep.subr.bf16.mxu0 0
  %573 = vmatpush1.bf16.msra.mxu0 0
  %574 = vmatprep.subr.bf16.mxu0 0
  %575 = vmatpush1.bf16.msra.mxu0 0
  %576 = vmatprep.subr.bf16.mxu0 0
  %577 = vmatpush1.bf16.msra.mxu0 0
  %578 = vmatprep.subr.bf16.mxu0 0
  %579 = vmatpush1.bf16.msra.mxu0 0
  %580 = vmatprep.subr.bf16.mxu0 0
  %581 = vmatpush1.bf16.msra.mxu0 0
  %582 = vmatprep.subr.bf16.mxu0 0
  %583 = vmatpush1.bf16.msra.mxu0 0
  %584 = vmatprep.subr.bf16.mxu0 0
  %585 = vmatpush1.bf16.msra.mxu0 0
  %586 = vmatprep.subr.bf16.mxu0 0
  %587 = vmatpush1.bf16.msra.mxu0 0
  %588 = vmatprep.subr.bf16.mxu0 0
  %589 = vmatpush1.bf16.msra.mxu0 0
  %590 = vmatprep.subr.bf16.mxu0 0
  %591 = vmatpush1.bf16.msra.mxu0 0
  %592 = vmatprep.subr.bf16.mxu0 0
  %593 = vmatpush1.bf16.msra.mxu0 0
  %594 = vmatprep.subr.bf16.mxu0 0
  %595 = vmatpush1.bf16.msra.mxu0 0
  %596 = vmatprep.subr.bf16.mxu0 0
  %597 = vmatpush1.bf16.msra.mxu0 0
  %598 = vmatprep.mubr.bf16.mxu0 0
  %599 = vmatmul.mubr.bf16.gmra.mrb[0].mxu0 %v564
  %v600 = vpop.f32.mrb[0].mxu0
  %v601 = vadd.f32 0.0, %v600
  %v602 = vpop.f32.mrb[0].mxu0
  %v603 = vpop.f32.mrb[0].mxu0
  %v604 = vpop.f32.mrb[0].mxu0
  %605 = vdwg.mxu0
  %v606 = vadd.f32 %v173, %v601
  %v607 = vxor.u32 %v606, 2147483648
  %v608 = vmul.f32 %v607, 1.442695
  %v609 = vpow.pop %v608
  %v610 = vadd.f32 %v609, 1.0
  %v611 = vrcp.pop %v610
  %v612 = vmul.f32 1.0, %v611
  %v613 = vtanh.pop %v606
  %v614 = vmul.f32 %v612, %v552
  %616 = vrot.lane.b32.xlu0 %v613, 64
  %v617 = vpop.permute.xlu0 %616
  %v619 = vmul.f32 %v612, %v617
  %621 = vrot.lane.b32.xlu0 %v619, 32
  %v622 = vpop.permute.xlu0 %621
  %v624 = vadd.f32 %v614, %v622
  %v625 = vtanh.pop %v624
  %627 = vrot.lane.b32.xlu0 %v625, 64
  %v628 = vpop.permute.xlu0 %627
  %v630 = vmul.f32 %v612, %v628
  %v631 = vpack.c.bf16 %v630, %v630
  %633 = vrot.lane.b32.xlu0 %v631, 32
  %v634 = vpop.permute.xlu0 %633
  %v636 = vsel %vm106, %v634, 0
  %638 = vmatprep.subr.bf16.mxu0 0
  %639 = vmatpush1.bf16.msra.mxu0 %v195
  %640 = vmatprep.subr.bf16.mxu0 0
  %641 = vmatpush1.bf16.msra.mxu0 %v196
  %642 = vmatprep.subr.bf16.mxu0 0
  %643 = vmatpush1.bf16.msra.mxu0 0
  %644 = vmatprep.subr.bf16.mxu0 0
  %645 = vmatpush1.bf16.msra.mxu0 0
  %646 = vmatprep.subr.bf16.mxu0 0
  %647 = vmatpush1.bf16.msra.mxu0 0
  %648 = vmatprep.subr.bf16.mxu0 0
  %649 = vmatpush1.bf16.msra.mxu0 0
  %650 = vmatprep.subr.bf16.mxu0 0
  %651 = vmatpush1.bf16.msra.mxu0 0
  %652 = vmatprep.subr.bf16.mxu0 0
  %653 = vmatpush1.bf16.msra.mxu0 0
  %654 = vmatprep.subr.bf16.mxu0 0
  %655 = vmatpush1.bf16.msra.mxu0 0
  %656 = vmatprep.subr.bf16.mxu0 0
  %657 = vmatpush1.bf16.msra.mxu0 0
  %658 = vmatprep.subr.bf16.mxu0 0
  %659 = vmatpush1.bf16.msra.mxu0 0
  %660 = vmatprep.subr.bf16.mxu0 0
  %661 = vmatpush1.bf16.msra.mxu0 0
  %662 = vmatprep.subr.bf16.mxu0 0
  %663 = vmatpush1.bf16.msra.mxu0 0
  %664 = vmatprep.subr.bf16.mxu0 0
  %665 = vmatpush1.bf16.msra.mxu0 0
  %666 = vmatprep.subr.bf16.mxu0 0
  %667 = vmatpush1.bf16.msra.mxu0 0
  %668 = vmatprep.subr.bf16.mxu0 0
  %669 = vmatpush1.bf16.msra.mxu0 0
  %670 = vmatprep.mubr.bf16.mxu0 0
  %671 = vmatmul.mubr.bf16.gmra.mrb[0].mxu0 %v636
  %v672 = vpop.f32.mrb[0].mxu0
  %v673 = vadd.f32 0.0, %v672
  %v674 = vpop.f32.mrb[0].mxu0
  %v675 = vpop.f32.mrb[0].mxu0
  %v676 = vpop.f32.mrb[0].mxu0
  %677 = vdwg.mxu0
  %v678 = vadd.f32 %v178, %v673
  %v679 = vxor.u32 %v678, 2147483648
  %v680 = vmul.f32 %v679, 1.442695
  %v681 = vpow.pop %v680
  %v682 = vadd.f32 %v681, 1.0
  %v683 = vrcp.pop %v682
  %v684 = vmul.f32 1.0, %v683
  %v685 = vtanh.pop %v678
  %v686 = vmul.f32 %v684, %v624
  %688 = vrot.lane.b32.xlu0 %v685, 64
  %v689 = vpop.permute.xlu0 %688
  %v691 = vmul.f32 %v684, %v689
  %693 = vrot.lane.b32.xlu0 %v691, 32
  %v694 = vpop.permute.xlu0 %693
  %v696 = vadd.f32 %v686, %v694
  %v697 = vtanh.pop %v696
  %699 = vrot.lane.b32.xlu0 %v697, 64
  %v700 = vpop.permute.xlu0 %699
  %v702 = vmul.f32 %v684, %v700
  %v703 = vpack.c.bf16 %v702, %v702
  %705 = vrot.lane.b32.xlu0 %v703, 32
  %v706 = vpop.permute.xlu0 %705
  %v708 = vsel %vm106, %v706, 0
  %710 = vmatprep.subr.bf16.mxu0 0
  %711 = vmatpush1.bf16.msra.mxu0 %v195
  %712 = vmatprep.subr.bf16.mxu0 0
  %713 = vmatpush1.bf16.msra.mxu0 %v196
  %714 = vmatprep.subr.bf16.mxu0 0
  %715 = vmatpush1.bf16.msra.mxu0 0
  %716 = vmatprep.subr.bf16.mxu0 0
  %717 = vmatpush1.bf16.msra.mxu0 0
  %718 = vmatprep.subr.bf16.mxu0 0
  %719 = vmatpush1.bf16.msra.mxu0 0
  %720 = vmatprep.subr.bf16.mxu0 0
  %721 = vmatpush1.bf16.msra.mxu0 0
  %722 = vmatprep.subr.bf16.mxu0 0
  %723 = vmatpush1.bf16.msra.mxu0 0
  %724 = vmatprep.subr.bf16.mxu0 0
  %725 = vmatpush1.bf16.msra.mxu0 0
  %726 = vmatprep.subr.bf16.mxu0 0
  %727 = vmatpush1.bf16.msra.mxu0 0
  %728 = vmatprep.subr.bf16.mxu0 0
  %729 = vmatpush1.bf16.msra.mxu0 0
  %730 = vmatprep.subr.bf16.mxu0 0
  %731 = vmatpush1.bf16.msra.mxu0 0
  %732 = vmatprep.subr.bf16.mxu0 0
  %733 = vmatpush1.bf16.msra.mxu0 0
  %734 = vmatprep.subr.bf16.mxu0 0
  %735 = vmatpush1.bf16.msra.mxu0 0
  %736 = vmatprep.subr.bf16.mxu0 0
  %737 = vmatpush1.bf16.msra.mxu0 0
  %738 = vmatprep.subr.bf16.mxu0 0
  %739 = vmatpush1.bf16.msra.mxu0 0
  %740 = vmatprep.subr.bf16.mxu0 0
  %741 = vmatpush1.bf16.msra.mxu0 0
  %742 = vmatprep.mubr.bf16.mxu0 0
  %743 = vmatmul.mubr.bf16.gmra.mrb[0].mxu0 %v708
  %v744 = vpop.f32.mrb[0].mxu0
  %v745 = vadd.f32 0.0, %v744
  %v746 = vpop.f32.mrb[0].mxu0
  %v747 = vpop.f32.mrb[0].mxu0
  %v748 = vpop.f32.mrb[0].mxu0
  %749 = vdwg.mxu0
  %v750 = vadd.f32 %v181, %v745
  %v751 = vxor.u32 %v750, 2147483648
  %v752 = vmul.f32 %v751, 1.442695
  %v753 = vpow.pop %v752
  %v754 = vadd.f32 %v753, 1.0
  %v755 = vrcp.pop %v754
  %v756 = vmul.f32 1.0, %v755
  %v757 = vtanh.pop %v750
  %v758 = vmul.f32 %v756, %v696
  %760 = vrot.lane.b32.xlu0 %v757, 64
  %v761 = vpop.permute.xlu0 %760
  %v763 = vmul.f32 %v756, %v761
  %765 = vrot.lane.b32.xlu0 %v763, 32
  %v766 = vpop.permute.xlu0 %765
  %v768 = vadd.f32 %v758, %v766
  %v769 = vtanh.pop %v768
  %771 = vrot.lane.b32.xlu0 %v769, 64
  %v772 = vpop.permute.xlu0 %771
  %v774 = vmul.f32 %v756, %v772
  %v775 = vld [vmem:[%s5] sm:$0xf]
  %v776 = vld [vmem:[%s5 + $0x4] sm:$0xf]
  %v777 = vld [vmem:[%s5 + $0x8] sm:$0xf]
  %v778 = vld [vmem:[%s5 + $0xc] sm:$0xf]
  %v779 = vld [vmem:[%s6] sm:$0xf]
  %v780 = vld [vmem:[%s6 + $0x4] sm:$0xf]
  %v781 = vld [vmem:[%s6 + $0x8] sm:$0xf]
  %v782 = vld [vmem:[%s6 + $0xc] sm:$0xf]
  %v783 = vld [vmem:[%s1] sm:$0xf]
  %v784 = vld [vmem:[%s1 + $0x4] sm:$0xf]
  %v785 = vld [vmem:[%s1 + $0x8] sm:$0xf]
  %v786 = vld [vmem:[%s1 + $0xc] sm:$0xf]
  %v787 = vld [vmem:[%s1 + $0x10] sm:$0xf]
  %v788 = vld [vmem:[%s1 + $0x14] sm:$0xf]
  %v789 = vld [vmem:[%s7] sm:$0x1]
  %v791 = vlaneseq
  %v792 = vshrl.u32 %v791, 7
  %v793 = vsub.s32 0, %v792
  %v794 = vrot.slane %v789, %v793
  %v802 = vunpack.c.l.b16 %v783
  %v803 = vunpack.c.l.b16 %v784
  %v804 = vunpack.c.l.b16 %v785
  %v805 = vunpack.c.l.b16 %v786
  %v806 = vunpack.c.l.b16 %v787
  %v807 = vunpack.c.l.b16 %v788
  %v808 = vpack.c.b16 %v803, %v802
  %v809 = vpack.c.b16 %v805, %v804
  %v810 = vpack.c.b16 %v807, %v806
  %v815 = vunpack.c.l.b16 %v775
  %v816 = vunpack.c.l.b16 %v776
  %v817 = vunpack.c.l.b16 %v777
  %v818 = vunpack.c.l.b16 %v778
  %v819 = vpack.c.b16 %v816, %v815
  %v820 = vpack.c.b16 %v818, %v817
  %v824 = vsel %vm106, %v808, 0
  %v827 = vsel %vm106, %v809, 0
  %v830 = vsel %vm106, %v810, 0
  %832 = vmatprep.subr.bf16.mxu0 0
  %833 = vmatpush1.bf16.msra.mxu0 %v819
  %834 = vmatprep.subr.bf16.mxu0 0
  %835 = vmatpush1.bf16.msra.mxu0 %v820
  %836 = vmatprep.subr.bf16.mxu0 0
  %837 = vmatpush1.bf16.msra.mxu0 0
  %838 = vmatprep.subr.bf16.mxu0 0
  %839 = vmatpush1.bf16.msra.mxu0 0
  %840 = vmatprep.subr.bf16.mxu0 0
  %841 = vmatpush1.bf16.msra.mxu0 0
  %842 = vmatprep.subr.bf16.mxu0 0
  %843 = vmatpush1.bf16.msra.mxu0 0
  %844 = vmatprep.subr.bf16.mxu0 0
  %845 = vmatpush1.bf16.msra.mxu0 0
  %846 = vmatprep.subr.bf16.mxu0 0
  %847 = vmatpush1.bf16.msra.mxu0 0
  %848 = vmatprep.subr.bf16.mxu0 0
  %849 = vmatpush1.bf16.msra.mxu0 0
  %850 = vmatprep.subr.bf16.mxu0 0
  %851 = vmatpush1.bf16.msra.mxu0 0
  %852 = vmatprep.subr.bf16.mxu0 0
  %853 = vmatpush1.bf16.msra.mxu0 0
  %854 = vmatprep.subr.bf16.mxu0 0
  %855 = vmatpush1.bf16.msra.mxu0 0
  %856 = vmatprep.subr.bf16.mxu0 0
  %857 = vmatpush1.bf16.msra.mxu0 0
  %858 = vmatprep.subr.bf16.mxu0 0
  %859 = vmatpush1.bf16.msra.mxu0 0
  %860 = vmatprep.subr.bf16.mxu0 0
  %861 = vmatpush1.bf16.msra.mxu0 0
  %862 = vmatprep.subr.bf16.mxu0 0
  %863 = vmatpush1.bf16.msra.mxu0 0
  %864 = vmatprep.mubr.bf16.mxu0 0
  %865 = vmatmul.mubr.bf16.gmra.mrb[0].mxu0 %v824
  %v866 = vpop.f32.mrb[0].mxu0
  %v867 = vadd.f32 %v794, %v866
  %v868 = vpop.f32.mrb[0].mxu0
  %v869 = vpop.f32.mrb[0].mxu0
  %v870 = vadd.f32 %v794, %v869
  %v871 = vpop.f32.mrb[0].mxu0
  %872 = vmatprep.mubr.bf16.mxu0 0
  %873 = vmatmul.mubr.bf16.gmra.mrb[0].mxu0 %v827
  %v874 = vpop.f32.mrb[0].mxu0
  %v875 = vadd.f32 %v794, %v874
  %v876 = vpop.f32.mrb[0].mxu0
  %v877 = vpop.f32.mrb[0].mxu0
  %v878 = vadd.f32 %v794, %v877
  %v879 = vpop.f32.mrb[0].mxu0
  %880 = vmatprep.mubr.bf16.mxu0 0
  %881 = vmatmul.mubr.bf16.gmra.mrb[0].mxu0 %v830
  %v882 = vpop.f32.mrb[0].mxu0
  %v883 = vadd.f32 %v794, %v882
  %v884 = vpop.f32.mrb[0].mxu0
  %v885 = vpop.f32.mrb[0].mxu0
  %v886 = vadd.f32 %v794, %v885
  %v887 = vpop.f32.mrb[0].mxu0
  %888 = vdwg.mxu0
  %v889 = vld [vmem:[%s10] sm:$0xff]
  %v890 = vld [vmem:[%s11] sm:$0xff]
  %v891 = vpack.c.bf16 %v889, %v889
  %v896 = vunpack.c.l.b16 %v779
  %v897 = vunpack.c.l.b16 %v780
  %v898 = vunpack.c.l.b16 %v781
  %v899 = vunpack.c.l.b16 %v782
  %v900 = vpack.c.b16 %v897, %v896
  %v901 = vpack.c.b16 %v899, %v898
  %v905 = vsel %vm106, %v891, 0
  %907 = vmatprep.subr.bf16.mxu0 0
  %908 = vmatpush1.bf16.msra.mxu0 %v900
  %909 = vmatprep.subr.bf16.mxu0 0
  %910 = vmatpush1.bf16.msra.mxu0 %v901
  %911 = vmatprep.subr.bf16.mxu0 0
  %912 = vmatpush1.bf16.msra.mxu0 0
  %913 = vmatprep.subr.bf16.mxu0 0
  %914 = vmatpush1.bf16.msra.mxu0 0
  %915 = vmatprep.subr.bf16.mxu0 0
  %916 = vmatpush1.bf16.msra.mxu0 0
  %917 = vmatprep.subr.bf16.mxu0 0
  %918 = vmatpush1.bf16.msra.mxu0 0
  %919 = vmatprep.subr.bf16.mxu0 0
  %920 = vmatpush1.bf16.msra.mxu0 0
  %921 = vmatprep.subr.bf16.mxu0 0
  %922 = vmatpush1.bf16.msra.mxu0 0
  %923 = vmatprep.subr.bf16.mxu0 0
  %924 = vmatpush1.bf16.msra.mxu0 0
  %925 = vmatprep.subr.bf16.mxu0 0
  %926 = vmatpush1.bf16.msra.mxu0 0
  %927 = vmatprep.subr.bf16.mxu0 0
  %928 = vmatpush1.bf16.msra.mxu0 0
  %929 = vmatprep.subr.bf16.mxu0 0
  %930 = vmatpush1.bf16.msra.mxu0 0
  %931 = vmatprep.subr.bf16.mxu0 0
  %932 = vmatpush1.bf16.msra.mxu0 0
  %933 = vmatprep.subr.bf16.mxu0 0
  %934 = vmatpush1.bf16.msra.mxu0 0
  %935 = vmatprep.subr.bf16.mxu0 0
  %936 = vmatpush1.bf16.msra.mxu0 0
  %937 = vmatprep.subr.bf16.mxu0 0
  %938 = vmatpush1.bf16.msra.mxu0 0
  %939 = vmatprep.mubr.bf16.mxu0 0
  %940 = vmatmul.mubr.bf16.gmra.mrb[0].mxu0 %v905
  %v941 = vpop.f32.mrb[0].mxu0
  %v942 = vadd.f32 0.0, %v941
  %v943 = vpop.f32.mrb[0].mxu0
  %v944 = vpop.f32.mrb[0].mxu0
  %v945 = vpop.f32.mrb[0].mxu0
  %946 = vdwg.mxu0
  %v947 = vadd.f32 %v867, %v942
  %v948 = vxor.u32 %v947, 2147483648
  %v949 = vmul.f32 %v948, 1.442695
  %v950 = vpow.pop %v949
  %v951 = vadd.f32 %v950, 1.0
  %v952 = vrcp.pop %v951
  %v953 = vmul.f32 1.0, %v952
  %v954 = vtanh.pop %v947
  %956 = vrot.lane.b32.xlu0 %v890, 32
  %v957 = vpop.permute.xlu0 %956
  %v959 = vmul.f32 %v953, %v957
  %961 = vrot.lane.b32.xlu0 %v954, 64
  %v962 = vpop.permute.xlu0 %961
  %v964 = vmul.f32 %v953, %v962
  %966 = vrot.lane.b32.xlu0 %v964, 32
  %v967 = vpop.permute.xlu0 %966
  %v969 = vadd.f32 %v959, %v967
  %v970 = vtanh.pop %v969
  %972 = vrot.lane.b32.xlu0 %v970, 64
  %v973 = vpop.permute.xlu0 %972
  %v975 = vmul.f32 %v953, %v973
  %v976 = vpack.c.bf16 %v975, %v975
  %978 = vrot.lane.b32.xlu0 %v976, 32
  %v979 = vpop.permute.xlu0 %978
  %v981 = vsel %vm106, %v979, 0
  %983 = vmatprep.subr.bf16.mxu0 0
  %984 = vmatpush1.bf16.msra.mxu0 %v900
  %985 = vmatprep.subr.bf16.mxu0 0
  %986 = vmatpush1.bf16.msra.mxu0 %v901
  %987 = vmatprep.subr.bf16.mxu0 0
  %988 = vmatpush1.bf16.msra.mxu0 0
  %989 = vmatprep.subr.bf16.mxu0 0
  %990 = vmatpush1.bf16.msra.mxu0 0
  %991 = vmatprep.subr.bf16.mxu0 0
  %992 = vmatpush1.bf16.msra.mxu0 0
  %993 = vmatprep.subr.bf16.mxu0 0
  %994 = vmatpush1.bf16.msra.mxu0 0
  %995 = vmatprep.subr.bf16.mxu0 0
  %996 = vmatpush1.bf16.msra.mxu0 0
  %997 = vmatprep.subr.bf16.mxu0 0
  %998 = vmatpush1.bf16.msra.mxu0 0
  %999 = vmatprep.subr.bf16.mxu0 0
  %1000 = vmatpush1.bf16.msra.mxu0 0
  %1001 = vmatprep.subr.bf16.mxu0 0
  %1002 = vmatpush1.bf16.msra.mxu0 0
  %1003 = vmatprep.subr.bf16.mxu0 0
  %1004 = vmatpush1.bf16.msra.mxu0 0
  %1005 = vmatprep.subr.bf16.mxu0 0
  %1006 = vmatpush1.bf16.msra.mxu0 0
  %1007 = vmatprep.subr.bf16.mxu0 0
  %1008 = vmatpush1.bf16.msra.mxu0 0
  %1009 = vmatprep.subr.bf16.mxu0 0
  %1010 = vmatpush1.bf16.msra.mxu0 0
  %1011 = vmatprep.subr.bf16.mxu0 0
  %1012 = vmatpush1.bf16.msra.mxu0 0
  %1013 = vmatprep.subr.bf16.mxu0 0
  %1014 = vmatpush1.bf16.msra.mxu0 0
  %1015 = vmatprep.mubr.bf16.mxu0 0
  %1016 = vmatmul.mubr.bf16.gmra.mrb[0].mxu0 %v981
  %v1017 = vpop.f32.mrb[0].mxu0
  %v1018 = vadd.f32 0.0, %v1017
  %v1019 = vpop.f32.mrb[0].mxu0
  %v1020 = vpop.f32.mrb[0].mxu0
  %v1021 = vpop.f32.mrb[0].mxu0
  %1022 = vdwg.mxu0
  %v1023 = vadd.f32 %v870, %v1018
  %v1024 = vxor.u32 %v1023, 2147483648
  %v1025 = vmul.f32 %v1024, 1.442695
  %v1026 = vpow.pop %v1025
  %v1027 = vadd.f32 %v1026, 1.0
  %v1028 = vrcp.pop %v1027
  %v1029 = vmul.f32 1.0, %v1028
  %v1030 = vtanh.pop %v1023
  %v1031 = vmul.f32 %v1029, %v969
  %1033 = vrot.lane.b32.xlu0 %v1030, 64
  %v1034 = vpop.permute.xlu0 %1033
  %v1036 = vmul.f32 %v1029, %v1034
  %1038 = vrot.lane.b32.xlu0 %v1036, 32
  %v1039 = vpop.permute.xlu0 %1038
  %v1041 = vadd.f32 %v1031, %v1039
  %v1042 = vtanh.pop %v1041
  %1044 = vrot.lane.b32.xlu0 %v1042, 64
  %v1045 = vpop.permute.xlu0 %1044
  %v1047 = vmul.f32 %v1029, %v1045
  %v1048 = vpack.c.bf16 %v1047, %v1047
  %1050 = vrot.lane.b32.xlu0 %v1048, 32
  %v1051 = vpop.permute.xlu0 %1050
  %v1053 = vsel %vm106, %v1051, 0
  %1055 = vmatprep.subr.bf16.mxu0 0
  %1056 = vmatpush1.bf16.msra.mxu0 %v900
  %1057 = vmatprep.subr.bf16.mxu0 0
  %1058 = vmatpush1.bf16.msra.mxu0 %v901
  %1059 = vmatprep.subr.bf16.mxu0 0
  %1060 = vmatpush1.bf16.msra.mxu0 0
  %1061 = vmatprep.subr.bf16.mxu0 0
  %1062 = vmatpush1.bf16.msra.mxu0 0
  %1063 = vmatprep.subr.bf16.mxu0 0
  %1064 = vmatpush1.bf16.msra.mxu0 0
  %1065 = vmatprep.subr.bf16.mxu0 0
  %1066 = vmatpush1.bf16.msra.mxu0 0
  %1067 = vmatprep.subr.bf16.mxu0 0
  %1068 = vmatpush1.bf16.msra.mxu0 0
  %1069 = vmatprep.subr.bf16.mxu0 0
  %1070 = vmatpush1.bf16.msra.mxu0 0
  %1071 = vmatprep.subr.bf16.mxu0 0
  %1072 = vmatpush1.bf16.msra.mxu0 0
  %1073 = vmatprep.subr.bf16.mxu0 0
  %1074 = vmatpush1.bf16.msra.mxu0 0
  %1075 = vmatprep.subr.bf16.mxu0 0
  %1076 = vmatpush1.bf16.msra.mxu0 0
  %1077 = vmatprep.subr.bf16.mxu0 0
  %1078 = vmatpush1.bf16.msra.mxu0 0
  %1079 = vmatprep.subr.bf16.mxu0 0
  %1080 = vmatpush1.bf16.msra.mxu0 0
  %1081 = vmatprep.subr.bf16.mxu0 0
  %1082 = vmatpush1.bf16.msra.mxu0 0
  %1083 = vmatprep.subr.bf16.mxu0 0
  %1084 = vmatpush1.bf16.msra.mxu0 0
  %1085 = vmatprep.subr.bf16.mxu0 0
  %1086 = vmatpush1.bf16.msra.mxu0 0
  %1087 = vmatprep.mubr.bf16.mxu0 0
  %1088 = vmatmul.mubr.bf16.gmra.mrb[0].mxu0 %v1053
  %v1089 = vpop.f32.mrb[0].mxu0
  %v1090 = vadd.f32 0.0, %v1089
  %v1091 = vpop.f32.mrb[0].mxu0
  %v1092 = vpop.f32.mrb[0].mxu0
  %v1093 = vpop.f32.mrb[0].mxu0
  %1094 = vdwg.mxu0
  %v1095 = vadd.f32 %v875, %v1090
  %v1096 = vxor.u32 %v1095, 2147483648
  %v1097 = vmul.f32 %v1096, 1.442695
  %v1098 = vpow.pop %v1097
  %v1099 = vadd.f32 %v1098, 1.0
  %v1100 = vrcp.pop %v1099
  %v1101 = vmul.f32 1.0, %v1100
  %v1102 = vtanh.pop %v1095
  %v1103 = vmul.f32 %v1101, %v1041
  %1105 = vrot.lane.b32.xlu0 %v1102, 64
  %v1106 = vpop.permute.xlu0 %1105
  %v1108 = vmul.f32 %v1101, %v1106
  %1110 = vrot.lane.b32.xlu0 %v1108, 32
  %v1111 = vpop.permute.xlu0 %1110
  %v1113 = vadd.f32 %v1103, %v1111
  %v1114 = vtanh.pop %v1113
  %1116 = vrot.lane.b32.xlu0 %v1114, 64
  %v1117 = vpop.permute.xlu0 %1116
  %v1119 = vmul.f32 %v1101, %v1117
  %v1120 = vpack.c.bf16 %v1119, %v1119
  %1122 = vrot.lane.b32.xlu0 %v1120, 32
  %v1123 = vpop.permute.xlu0 %1122
  %v1125 = vsel %vm106, %v1123, 0
  %1127 = vmatprep.subr.bf16.mxu0 0
  %1128 = vmatpush1.bf16.msra.mxu0 %v900
  %1129 = vmatprep.subr.bf16.mxu0 0
  %1130 = vmatpush1.bf16.msra.mxu0 %v901
  %1131 = vmatprep.subr.bf16.mxu0 0
  %1132 = vmatpush1.bf16.msra.mxu0 0
  %1133 = vmatprep.subr.bf16.mxu0 0
  %1134 = vmatpush1.bf16.msra.mxu0 0
  %1135 = vmatprep.subr.bf16.mxu0 0
  %1136 = vmatpush1.bf16.msra.mxu0 0
  %1137 = vmatprep.subr.bf16.mxu0 0
  %1138 = vmatpush1.bf16.msra.mxu0 0
  %1139 = vmatprep.subr.bf16.mxu0 0
  %1140 = vmatpush1.bf16.msra.mxu0 0
  %1141 = vmatprep.subr.bf16.mxu0 0
  %1142 = vmatpush1.bf16.msra.mxu0 0
  %1143 = vmatprep.subr.bf16.mxu0 0
  %1144 = vmatpush1.bf16.msra.mxu0 0
  %1145 = vmatprep.subr.bf16.mxu0 0
  %1146 = vmatpush1.bf16.msra.mxu0 0
  %1147 = vmatprep.subr.bf16.mxu0 0
  %1148 = vmatpush1.bf16.msra.mxu0 0
  %1149 = vmatprep.subr.bf16.mxu0 0
  %1150 = vmatpush1.bf16.msra.mxu0 0
  %1151 = vmatprep.subr.bf16.mxu0 0
  %1152 = vmatpush1.bf16.msra.mxu0 0
  %1153 = vmatprep.subr.bf16.mxu0 0
  %1154 = vmatpush1.bf16.msra.mxu0 0
  %1155 = vmatprep.subr.bf16.mxu0 0
  %1156 = vmatpush1.bf16.msra.mxu0 0
  %1157 = vmatprep.subr.bf16.mxu0 0
  %1158 = vmatpush1.bf16.msra.mxu0 0
  %1159 = vmatprep.mubr.bf16.mxu0 0
  %1160 = vmatmul.mubr.bf16.gmra.mrb[0].mxu0 %v1125
  %v1161 = vpop.f32.mrb[0].mxu0
  %v1162 = vadd.f32 0.0, %v1161
  %v1163 = vpop.f32.mrb[0].mxu0
  %v1164 = vpop.f32.mrb[0].mxu0
  %v1165 = vpop.f32.mrb[0].mxu0
  %1166 = vdwg.mxu0
  %v1167 = vadd.f32 %v878, %v1162
  %v1168 = vxor.u32 %v1167, 2147483648
  %v1169 = vmul.f32 %v1168, 1.442695
  %v1170 = vpow.pop %v1169
  %v1171 = vadd.f32 %v1170, 1.0
  %v1172 = vrcp.pop %v1171
  %v1173 = vmul.f32 1.0, %v1172
  %v1174 = vtanh.pop %v1167
  %v1175 = vmul.f32 %v1173, %v1113
  %1177 = vrot.lane.b32.xlu0 %v1174, 64
  %v1178 = vpop.permute.xlu0 %1177
  %v1180 = vmul.f32 %v1173, %v1178
  %1182 = vrot.lane.b32.xlu0 %v1180, 32
  %v1183 = vpop.permute.xlu0 %1182
  %v1185 = vadd.f32 %v1175, %v1183
  %v1186 = vtanh.pop %v1185
  %1188 = vrot.lane.b32.xlu0 %v1186, 64
  %v1189 = vpop.permute.xlu0 %1188
  %v1191 = vmul.f32 %v1173, %v1189
  %v1192 = vpack.c.bf16 %v1191, %v1191
  %1194 = vrot.lane.b32.xlu0 %v1192, 32
  %v1195 = vpop.permute.xlu0 %1194
  %v1197 = vsel %vm106, %v1195, 0
  %1199 = vmatprep.subr.bf16.mxu0 0
  %1200 = vmatpush1.bf16.msra.mxu0 %v900
  %1201 = vmatprep.subr.bf16.mxu0 0
  %1202 = vmatpush1.bf16.msra.mxu0 %v901
  %1203 = vmatprep.subr.bf16.mxu0 0
  %1204 = vmatpush1.bf16.msra.mxu0 0
  %1205 = vmatprep.subr.bf16.mxu0 0
  %1206 = vmatpush1.bf16.msra.mxu0 0
  %1207 = vmatprep.subr.bf16.mxu0 0
  %1208 = vmatpush1.bf16.msra.mxu0 0
  %1209 = vmatprep.subr.bf16.mxu0 0
  %1210 = vmatpush1.bf16.msra.mxu0 0
  %1211 = vmatprep.subr.bf16.mxu0 0
  %1212 = vmatpush1.bf16.msra.mxu0 0
  %1213 = vmatprep.subr.bf16.mxu0 0
  %1214 = vmatpush1.bf16.msra.mxu0 0
  %1215 = vmatprep.subr.bf16.mxu0 0
  %1216 = vmatpush1.bf16.msra.mxu0 0
  %1217 = vmatprep.subr.bf16.mxu0 0
  %1218 = vmatpush1.bf16.msra.mxu0 0
  %1219 = vmatprep.subr.bf16.mxu0 0
  %1220 = vmatpush1.bf16.msra.mxu0 0
  %1221 = vmatprep.subr.bf16.mxu0 0
  %1222 = vmatpush1.bf16.msra.mxu0 0
  %1223 = vmatprep.subr.bf16.mxu0 0
  %1224 = vmatpush1.bf16.msra.mxu0 0
  %1225 = vmatprep.subr.bf16.mxu0 0
  %1226 = vmatpush1.bf16.msra.mxu0 0
  %1227 = vmatprep.subr.bf16.mxu0 0
  %1228 = vmatpush1.bf16.msra.mxu0 0
  %1229 = vmatprep.subr.bf16.mxu0 0
  %1230 = vmatpush1.bf16.msra.mxu0 0
  %1231 = vmatprep.mubr.bf16.mxu0 0
  %1232 = vmatmul.mubr.bf16.gmra.mrb[0].mxu0 %v1197
  %v1233 = vpop.f32.mrb[0].mxu0
  %v1234 = vadd.f32 0.0, %v1233
  %v1235 = vpop.f32.mrb[0].mxu0
  %v1236 = vpop.f32.mrb[0].mxu0
  %v1237 = vpop.f32.mrb[0].mxu0
  %1238 = vdwg.mxu0
  %v1239 = vadd.f32 %v883, %v1234
  %v1240 = vxor.u32 %v1239, 2147483648
  %v1241 = vmul.f32 %v1240, 1.442695
  %v1242 = vpow.pop %v1241
  %v1243 = vadd.f32 %v1242, 1.0
  %v1244 = vrcp.pop %v1243
  %v1245 = vmul.f32 1.0, %v1244
  %v1246 = vtanh.pop %v1239
  %v1247 = vmul.f32 %v1245, %v1185
  %1249 = vrot.lane.b32.xlu0 %v1246, 64
  %v1250 = vpop.permute.xlu0 %1249
  %v1252 = vmul.f32 %v1245, %v1250
  %1254 = vrot.lane.b32.xlu0 %v1252, 32
  %v1255 = vpop.permute.xlu0 %1254
  %v1257 = vadd.f32 %v1247, %v1255
  %v1258 = vtanh.pop %v1257
  %1260 = vrot.lane.b32.xlu0 %v1258, 64
  %v1261 = vpop.permute.xlu0 %1260
  %v1263 = vmul.f32 %v1245, %v1261
  %v1264 = vpack.c.bf16 %v1263, %v1263
  %1266 = vrot.lane.b32.xlu0 %v1264, 32
  %v1267 = vpop.permute.xlu0 %1266
  %v1269 = vsel %vm106, %v1267, 0
  %1271 = vmatprep.subr.bf16.mxu0 0
  %1272 = vmatpush1.bf16.msra.mxu0 %v900
  %1273 = vmatprep.subr.bf16.mxu0 0
  %1274 = vmatpush1.bf16.msra.mxu0 %v901
  %1275 = vmatprep.subr.bf16.mxu0 0
  %1276 = vmatpush1.bf16.msra.mxu0 0
  %1277 = vmatprep.subr.bf16.mxu0 0
  %1278 = vmatpush1.bf16.msra.mxu0 0
  %1279 = vmatprep.subr.bf16.mxu0 0
  %1280 = vmatpush1.bf16.msra.mxu0 0
  %1281 = vmatprep.subr.bf16.mxu0 0
  %1282 = vmatpush1.bf16.msra.mxu0 0
  %1283 = vmatprep.subr.bf16.mxu0 0
  %1284 = vmatpush1.bf16.msra.mxu0 0
  %1285 = vmatprep.subr.bf16.mxu0 0
  %1286 = vmatpush1.bf16.msra.mxu0 0
  %1287 = vmatprep.subr.bf16.mxu0 0
  %1288 = vmatpush1.bf16.msra.mxu0 0
  %1289 = vmatprep.subr.bf16.mxu0 0
  %1290 = vmatpush1.bf16.msra.mxu0 0
  %1291 = vmatprep.subr.bf16.mxu0 0
  %1292 = vmatpush1.bf16.msra.mxu0 0
  %1293 = vmatprep.subr.bf16.mxu0 0
  %1294 = vmatpush1.bf16.msra.mxu0 0
  %1295 = vmatprep.subr.bf16.mxu0 0
  %1296 = vmatpush1.bf16.msra.mxu0 0
  %1297 = vmatprep.subr.bf16.mxu0 0
  %1298 = vmatpush1.bf16.msra.mxu0 0
  %1299 = vmatprep.subr.bf16.mxu0 0
  %1300 = vmatpush1.bf16.msra.mxu0 0
  %1301 = vmatprep.subr.bf16.mxu0 0
  %1302 = vmatpush1.bf16.msra.mxu0 0
  %1303 = vmatprep.mubr.bf16.mxu0 0
  %1304 = vmatmul.mubr.bf16.gmra.mrb[0].mxu0 %v1269
  %v1305 = vpop.f32.mrb[0].mxu0
  %v1306 = vadd.f32 0.0, %v1305
  %v1307 = vpop.f32.mrb[0].mxu0
  %v1308 = vpop.f32.mrb[0].mxu0
  %v1309 = vpop.f32.mrb[0].mxu0
  %1310 = vdwg.mxu0
  %v1311 = vadd.f32 %v886, %v1306
  %v1312 = vxor.u32 %v1311, 2147483648
  %v1313 = vmul.f32 %v1312, 1.442695
  %v1314 = vpow.pop %v1313
  %v1315 = vadd.f32 %v1314, 1.0
  %v1316 = vrcp.pop %v1315
  %v1317 = vmul.f32 1.0, %v1316
  %v1318 = vtanh.pop %v1311
  %v1319 = vmul.f32 %v1317, %v1257
  %1321 = vrot.lane.b32.xlu0 %v1318, 64
  %v1322 = vpop.permute.xlu0 %1321
  %v1324 = vmul.f32 %v1317, %v1322
  %1326 = vrot.lane.b32.xlu0 %v1324, 32
  %v1327 = vpop.permute.xlu0 %1326
  %v1329 = vadd.f32 %v1319, %v1327
  %v1330 = vtanh.pop %v1329
  %1332 = vrot.lane.b32.xlu0 %v1330, 64
  %v1333 = vpop.permute.xlu0 %1332
  %v1335 = vmul.f32 %v1317, %v1333
  %v1336 = vpack.c.bf16 %v774, %v774
  %v1337 = vld [vmem:[%s12] sm:$0xf]
  %v1338 = vld [vmem:[%s12 + $0x4] sm:$0xf]
  %v1339 = vld [vmem:[%s12 + $0x8] sm:$0xf]
  %v1340 = vld [vmem:[%s12 + $0xc] sm:$0xf]
  %v1341 = vpack.c.bf16 %v1335, %v1335
  %v1342 = vld [vmem:[%s13] sm:$0xf]
  %v1343 = vld [vmem:[%s13 + $0x4] sm:$0xf]
  %v1344 = vld [vmem:[%s13 + $0x8] sm:$0xf]
  %v1345 = vld [vmem:[%s13 + $0xc] sm:$0xf]
  %1347 = vrot.lane.b32.xlu0 %v1341, 32
  %v1348 = vpop.permute.xlu0 %1347
  %v1353 = vunpack.c.l.b16 %v1342
  %v1354 = vunpack.c.l.b16 %v1343
  %v1355 = vunpack.c.l.b16 %v1344
  %v1356 = vunpack.c.l.b16 %v1345
  %v1357 = vpack.c.b16 %v1354, %v1353
  %v1358 = vpack.c.b16 %v1356, %v1355
  %v1362 = vsel %vm106, %v1348, 0
  %1364 = vmatprep.subr.bf16.mxu0 0
  %1365 = vmatpush1.bf16.msra.mxu0 %v1357
  %1366 = vmatprep.subr.bf16.mxu0 0
  %1367 = vmatpush1.bf16.msra.mxu0 %v1358
  %1368 = vmatprep.subr.bf16.mxu0 0
  %1369 = vmatpush1.bf16.msra.mxu0 0
  %1370 = vmatprep.subr.bf16.mxu0 0
  %1371 = vmatpush1.bf16.msra.mxu0 0
  %1372 = vmatprep.subr.bf16.mxu0 0
  %1373 = vmatpush1.bf16.msra.mxu0 0
  %1374 = vmatprep.subr.bf16.mxu0 0
  %1375 = vmatpush1.bf16.msra.mxu0 0
  %1376 = vmatprep.subr.bf16.mxu0 0
  %1377 = vmatpush1.bf16.msra.mxu0 0
  %1378 = vmatprep.subr.bf16.mxu0 0
  %1379 = vmatpush1.bf16.msra.mxu0 0
  %1380 = vmatprep.subr.bf16.mxu0 0
  %1381 = vmatpush1.bf16.msra.mxu0 0
  %1382 = vmatprep.subr.bf16.mxu0 0
  %1383 = vmatpush1.bf16.msra.mxu0 0
  %1384 = vmatprep.subr.bf16.mxu0 0
  %1385 = vmatpush1.bf16.msra.mxu0 0
  %1386 = vmatprep.subr.bf16.mxu0 0
  %1387 = vmatpush1.bf16.msra.mxu0 0
  %1388 = vmatprep.subr.bf16.mxu0 0
  %1389 = vmatpush1.bf16.msra.mxu0 0
  %1390 = vmatprep.subr.bf16.mxu0 0
  %1391 = vmatpush1.bf16.msra.mxu0 0
  %1392 = vmatprep.subr.bf16.mxu0 0
  %1393 = vmatpush1.bf16.msra.mxu0 0
  %1394 = vmatprep.subr.bf16.mxu0 0
  %1395 = vmatpush1.bf16.msra.mxu0 0
  %1396 = vmatprep.mubr.bf16.mxu0 0
  %1397 = vmatmul.mubr.bf16.gmra.mrb[0].mxu0 %v1362
  %v1398 = vpop.f32.mrb[0].mxu0
  %v1399 = vadd.f32 0.0, %v1398
  %v1400 = vpop.f32.mrb[0].mxu0
  %v1401 = vpop.f32.mrb[0].mxu0
  %v1402 = vpop.f32.mrb[0].mxu0
  %1403 = vdwg.mxu0
  %1405 = vrot.lane.b32.xlu0 %v1336, 32
  %v1406 = vpop.permute.xlu0 %1405
  %v1411 = vunpack.c.l.b16 %v1337
  %v1412 = vunpack.c.l.b16 %v1338
  %v1413 = vunpack.c.l.b16 %v1339
  %v1414 = vunpack.c.l.b16 %v1340
  %v1415 = vpack.c.b16 %v1412, %v1411
  %v1416 = vpack.c.b16 %v1414, %v1413
  %v1420 = vsel %vm106, %v1406, 0
  %1422 = vmatprep.subr.bf16.mxu0 0
  %1423 = vmatpush1.bf16.msra.mxu0 %v1415
  %1424 = vmatprep.subr.bf16.mxu0 0
  %1425 = vmatpush1.bf16.msra.mxu0 %v1416
  %1426 = vmatprep.subr.bf16.mxu0 0
  %1427 = vmatpush1.bf16.msra.mxu0 0
  %1428 = vmatprep.subr.bf16.mxu0 0
  %1429 = vmatpush1.bf16.msra.mxu0 0
  %1430 = vmatprep.subr.bf16.mxu0 0
  %1431 = vmatpush1.bf16.msra.mxu0 0
  %1432 = vmatprep.subr.bf16.mxu0 0
  %1433 = vmatpush1.bf16.msra.mxu0 0
  %1434 = vmatprep.subr.bf16.mxu0 0
  %1435 = vmatpush1.bf16.msra.mxu0 0
  %1436 = vmatprep.subr.bf16.mxu0 0
  %1437 = vmatpush1.bf16.msra.mxu0 0
  %1438 = vmatprep.subr.bf16.mxu0 0
  %1439 = vmatpush1.bf16.msra.mxu0 0
  %1440 = vmatprep.subr.bf16.mxu0 0
  %1441 = vmatpush1.bf16.msra.mxu0 0
  %1442 = vmatprep.subr.bf16.mxu0 0
  %1443 = vmatpush1.bf16.msra.mxu0 0
  %1444 = vmatprep.subr.bf16.mxu0 0
  %1445 = vmatpush1.bf16.msra.mxu0 0
  %1446 = vmatprep.subr.bf16.mxu0 0
  %1447 = vmatpush1.bf16.msra.mxu0 0
  %1448 = vmatprep.subr.bf16.mxu0 0
  %1449 = vmatpush1.bf16.msra.mxu0 0
  %1450 = vmatprep.subr.bf16.mxu0 0
  %1451 = vmatpush1.bf16.msra.mxu0 0
  %1452 = vmatprep.subr.bf16.mxu0 0
  %1453 = vmatpush1.bf16.msra.mxu0 0
  %1454 = vmatprep.mubr.bf16.mxu0 0
  %1455 = vmatmul.mubr.bf16.gmra.mrb[0].mxu0 %v1420
  %v1456 = vpop.f32.mrb[0].mxu0
  %v1457 = vadd.f32 %v1399, %v1456
  %v1458 = vpop.f32.mrb[0].mxu0
  %v1459 = vpop.f32.mrb[0].mxu0
  %v1460 = vpop.f32.mrb[0].mxu0
  %1461 = vdwg.mxu0
  %v1462 = vld [vmem:[%s14] sm:$0x1]
  %v1464 = vlaneseq
  %v1465 = vshrl.u32 %v1464, 7
  %v1466 = vsub.s32 0, %v1465
  %v1467 = vrot.slane %v1462, %v1466
  %v1469 = vadd.f32 %v1457, %v1467
  %v1470 = vlaneseq
  %v1471 = vand.u32 %v1470, 127
  %vm1472 = vcmp.lt.s32.totalorder %v1471, 3
  %v1473 = vsel %vm1472, %v1469, -1e+30
  %1474 = vmax.xlane.f32.xlu0 %v1473
  %v1475 = vpop.xlane.xlu0 %1474
  %v1476 = vsub.f32 %v1469, %v1475
  %v1477 = vmul.f32 %v1476, 1.442695
  %v1478 = vpow.pop %v1477
  %v1479 = vsel %vm1472, %v1478, 0.0
  %1480 = vadd.xlane.f32.xlu0 %v1479
  %v1481 = vpop.xlane.xlu0 %1480
  %v1482 = vrcp.pop %v1481
  %v1483 = vmul.f32 %v1479, %v1482
  %1484 = vst [vmem:[%s15] sm:$0xff] %v1483
  // Predicated region
  $region62: #{target_rnn_forward.1} parent=0 // pred_check
    _
  $region63: #{target_rnn_forward.1} parent=0 // pred_check_branch
    %1486 = sbr.rel (0) target = $region65
  $region64: #{target_rnn_forward.1} parent=0 // pred_region
    _
  $region65: #{target_rnn_forward.1} parent=0 // pred_fallthru
    _
  // Predicated region
  $region66: #{target_rnn_forward.1} parent=0 // pred_check
    _
  $region67: #{target_rnn_forward.1} parent=0 // pred_check_branch
    %1488 = sbr.rel (0) target = $region69
  $region68: #{target_rnn_forward.1} parent=0 // pred_region
    _
  $region69: #{target_rnn_forward.1} parent=0 // pred_fallthru
    _

</llo_original>
